<compile_context>
chip_gen: v6e
topology: v6e:2x2x1
jax: 0.10.0
libtpu: 0.0.40
codegen_flags: <defaults>
</compile_context>

<pallas_src>
import jax
import jax.numpy as jnp
from jax import lax
from jax.experimental import pallas as pl
from jax.experimental.pallas import tpu as pltpu


COMPUTE_DTYPE = jnp.bfloat16   # MXU operand dtype; accumulation is always f32
FEAT_PAD = 128                 # lane-dense padded feature width
NODE_PAD = 128                 # lane-dense padded node count (multiple of 128)


# ---------------------------------------------------------------------------
# Fused Pallas kernel: the whole GCN stack in one invocation.
#   x0_ref : (Np, FP) f32   padded input features
#   adj_ref: (Np, Np) bf16  padded normalized adjacency
#   w_ref  : (L, FP, FP) bf16
#   vec_ref: (L, 3, FP) f32   rows = [bias, bn_scale, bn_shift]
#   out_ref: (Np, FP) f32
# ---------------------------------------------------------------------------
def fused_gnn_kernel(x0_ref, adj_ref, w_ref, vec_ref, out_ref):
    num_layers = w_ref.shape[0]

    def gcn_layer(l, x):
        vec = vec_ref[l]                       # one (3, FP) load
        b, scale, shift = vec[0:1, :], vec[1:2, :], vec[2:3, :]
        # linear: x @ W + b            (MXU, bf16 operands, f32 accumulate)
        h = jnp.dot(x.astype(COMPUTE_DTYPE), w_ref[l],
                    preferred_element_type=jnp.float32) + b
        # graph propagation: adj @ h   (MXU, bf16 operands, f32 accumulate)
        z = jnp.dot(adj_ref[...], h.astype(COMPUTE_DTYPE),
                    preferred_element_type=jnp.float32)
        # fused eval-mode BatchNorm + ReLU, all f32 (VPU; v5e-safe epilogue)
        return jnp.maximum(z * scale + shift, 0.0)

    # Layer 0: no residual.
    x = gcn_layer(0, x0_ref[...])

    # Layers 1..L-1: residual add (residual == previous x_new == x); dropout
    # is identity in eval mode.
    x = lax.fori_loop(1, num_layers,
                      lambda l, xc: gcn_layer(l, xc) + xc,
                      x, unroll=True)

    out_ref[...] = x


@jax.jit
def gnn_encoder_forward(x_pad, adj_pad, w_stack, vec_stack):
    """x_pad: (Np, FP) f32, adj_pad: (Np, Np) bf16, w_stack: (L, FP, FP) bf16,
    vec_stack: (L, 3, FP) f32. Returns padded (Np, FP) f32 activations."""
    n_pad, fp = x_pad.shape
    vmem_spec = pl.BlockSpec(memory_space=pltpu.MemorySpace.VMEM)
    return pl.pallas_call(
        fused_gnn_kernel,
        out_shape=jax.ShapeDtypeStruct((n_pad, fp), jnp.float32),
        in_specs=[vmem_spec, vmem_spec, vmem_spec, vmem_spec],
        out_specs=vmem_spec,
        compiler_params=pltpu.CompilerParams(
            # Generous for toy shapes; re-derive per generation for large N
            # (<=~100 MiB on v5e/v6e, <=~56 MiB on v7x).
            vmem_limit_bytes=32 * 1024 * 1024),
    )(x_pad, adj_pad, w_stack, vec_stack)


# ---------------------------------------------------------------------------
# Parameter construction (deterministic, in-script) and packing
# ---------------------------------------------------------------------------
def make_params(key, in_features, hidden_size, out_features, num_layers):
    dims = ([(in_features, hidden_size)]
            + [(hidden_size, hidden_size)] * (num_layers - 2)
            + [(hidden_size, out_features)])
    eps = 1e-5
    params = []
    for fin, fout in dims:
        key, kw, kb, kg, kbe, km, kv = jax.random.split(key, 7)
        w = jax.random.normal(kw, (fin, fout), jnp.float32) * 0.1
        b = jax.random.normal(kb, (fout,), jnp.float32) * 0.1
        gamma = 1.0 + 0.1 * jax.random.normal(kg, (fout,), jnp.float32)
        beta = 0.1 * jax.random.normal(kbe, (fout,), jnp.float32)
        running_mean = 0.1 * jax.random.normal(km, (fout,), jnp.float32)
        running_var = jax.random.uniform(kv, (fout,), jnp.float32, 0.5, 1.5)
        # fuse eval-mode BN into per-feature scale / shift
        scale = gamma / jnp.sqrt(running_var + eps)
        shift = beta - running_mean * scale
        params.append((w, b, scale, shift))
    return params


def pack_params(params, feat_pad):
    """Zero-pad per-layer params to (FP, FP) / (3, FP) and stack over layers.
    Padded lanes get W=0, b=0, scale=0, shift=0 so they produce exact zeros."""
    num_layers = len(params)
    w_stack = jnp.zeros((num_layers, feat_pad, feat_pad), jnp.float32)
    vec_stack = jnp.zeros((num_layers, 3, feat_pad), jnp.float32)
    for l, (w, b, scale, shift) in enumerate(params):
        fin, fout = w.shape
        w_stack = w_stack.at[l, :fin, :fout].set(w)
        vec_stack = vec_stack.at[l, 0, :fout].set(b)
        vec_stack = vec_stack.at[l, 1, :fout].set(scale)
        vec_stack = vec_stack.at[l, 2, :fout].set(shift)
    return w_stack.astype(COMPUTE_DTYPE), vec_stack


def normalize_adj(adj):
    rowsum = adj.sum(1)
    d_inv_sqrt = jnp.power(rowsum, -0.5)
    d_inv_sqrt = jnp.where(jnp.isinf(d_inv_sqrt), 0.0, d_inv_sqrt)
    d = jnp.diag(d_inv_sqrt)
    return d @ adj @ d


# ---------------------------------------------------------------------------
# Pure-JAX reference: follows the PyTorch module op-by-op (eval mode) at the
# same mixed precision as the kernel (bf16 MXU operands, f32 accumulate /
# f32 BN+ReLU+residual epilogue).
# ---------------------------------------------------------------------------
def gnn_encoder_ref(x, adj, params):
    adj_c = adj.astype(COMPUTE_DTYPE)
    residual = None
    for (w, b, scale, shift) in params:
        h = jnp.dot(x.astype(COMPUTE_DTYPE), w.astype(COMPUTE_DTYPE),
                    preferred_element_type=jnp.float32) + b          # linear
        z = jnp.dot(adj_c, h.astype(COMPUTE_DTYPE),
                    preferred_element_type=jnp.float32)              # adj @ h
        y = jnp.maximum(z * scale + shift, 0.0)                      # BN(eval)+ReLU
        x_new = (y + residual) if residual is not None else y
        x = x_new                                                    # dropout = id (eval)
        residual = x_new
    return x


if __name__ == "__main__":
    # Small, forward-consistent shapes (out_features == hidden_size so the
    # residual add is shape-valid, as the PyTorch module requires).
    N = 16          # num_nodes
    IN_F = 8        # in_features
    HID = 32        # hidden_size
    OUT_F = 32      # out_features
    NUM_LAYERS = 6

    key = jax.random.PRNGKey(0)
    kx, ka, kp = jax.random.split(key, 3)

    # node features
    x = jax.random.normal(kx, (N, IN_F), jnp.float32)

    # adjacency: random symmetric 0/1 matrix + self loops, then normalized
    a = (jax.random.uniform(ka, (N, N)) > 0.7).astype(jnp.float32)
    a = jnp.maximum(a, a.T)
    adj2 = a + jnp.eye(N, dtype=jnp.float32)
    adj = normalize_adj(adj2)

    params = make_params(kp, IN_F, HID, OUT_F, NUM_LAYERS)
    w_stack, vec_stack = pack_params(params, FEAT_PAD)

    # Lane-dense zero-padding of features (to FEAT_PAD) and nodes (to NODE_PAD).
    # Padded adj rows/cols are zero, so padded nodes never feed real nodes.
    x_pad = jnp.zeros((NODE_PAD, FEAT_PAD), jnp.float32).at[:N, :IN_F].set(x)
    adj_pad = jnp.zeros((NODE_PAD, NODE_PAD), jnp.float32).at[:N, :N].set(adj)
    adj_pad = adj_pad.astype(COMPUTE_DTYPE)

    out_padded = gnn_encoder_forward(x_pad, adj_pad, w_stack, vec_stack)
    out_padded = jax.block_until_ready(out_padded)
    out = out_padded[:N, :OUT_F]

    ref = gnn_encoder_ref(x, adj, params)

    assert out.shape == (N, OUT_F)
    # padded feature lanes of the real node rows must stay exactly zero
    # (zeroed W columns / b / scale / shift lanes)
    assert bool(jnp.all(out_padded[:N, OUT_F:] == 0.0)), "padded lanes polluted"
    # bf16 MXU operands (f32 accumulation): tolerance ~ a few bf16 ULPs at the
    # output magnitude; kernel and reference share the same rounding points.
    assert jnp.allclose(out, ref, atol=5e-3, rtol=5e-3), "mismatch vs reference"

    print("KERNEL_OK")
</pallas_src>

<mosaic_0001>
module attributes {stable_mosaic.version = 11 : i64} {
  func.func @fused_gnn_kernel(%arg0: memref<128x128xf32, #tpu.memory_space<vmem>>, %arg1: memref<128x128xbf16, #tpu.memory_space<vmem>>, %arg2: memref<6x128x128xbf16, #tpu.memory_space<vmem>>, %arg3: memref<6x3x128xf32, #tpu.memory_space<vmem>>, %arg4: memref<128x128xf32, #tpu.memory_space<vmem>>) attributes {dimension_semantics = [], scalar_prefetch = 0 : i64, scratch_operands = 0 : i64, tpu.core_type = #tpu.core_type<tc>} {
    %c0 = arith.constant 0 : index
    %c0_0 = arith.constant 0 : index
    %0 = vector.load %arg0[%c0, %c0_0] : memref<128x128xf32, #tpu.memory_space<vmem>>, vector<128x128xf32>
    %c0_1 = arith.constant 0 : index
    %c0_2 = arith.constant 0 : index
    %c0_3 = arith.constant 0 : index
    %1 = vector.load %arg3[%c0_1, %c0_2, %c0_3] : memref<6x3x128xf32, #tpu.memory_space<vmem>>, vector<1x3x128xf32>
    %2 = vector.shape_cast %1 : vector<1x3x128xf32> to vector<3x128xf32>
    %3 = vector.extract_strided_slice %2 {offsets = [0, 0], sizes = [1, 128], strides = [1, 1]} : vector<3x128xf32> to vector<1x128xf32>
    %4 = vector.extract_strided_slice %2 {offsets = [1, 0], sizes = [1, 128], strides = [1, 1]} : vector<3x128xf32> to vector<1x128xf32>
    %5 = vector.extract_strided_slice %2 {offsets = [2, 0], sizes = [1, 128], strides = [1, 1]} : vector<3x128xf32> to vector<1x128xf32>
    %6 = arith.truncf %0 : vector<128x128xf32> to vector<128x128xbf16>
    %c0_4 = arith.constant 0 : index
    %c0_5 = arith.constant 0 : index
    %c0_6 = arith.constant 0 : index
    %7 = vector.load %arg2[%c0_4, %c0_5, %c0_6] : memref<6x128x128xbf16, #tpu.memory_space<vmem>>, vector<1x128x128xbf16>
    %8 = vector.shape_cast %7 : vector<1x128x128xbf16> to vector<128x128xbf16>
    %cst = arith.constant dense<0.000000e+00> : vector<128x128xf32>
    %9 = tpu.matmul %6, %8, %cst {dimension_numbers = #tpu.dot_dimension_numbers<[1], [0], [0], [1], [0, 0, 1, 1], [], []>} : vector<128x128xbf16>, vector<128x128xbf16>, vector<128x128xf32> -> vector<128x128xf32>
    %10 = vector.broadcast %3 : vector<1x128xf32> to vector<128x128xf32>
    %11 = arith.addf %9, %10 : vector<128x128xf32>
    %c0_7 = arith.constant 0 : index
    %c0_8 = arith.constant 0 : index
    %12 = vector.load %arg1[%c0_7, %c0_8] : memref<128x128xbf16, #tpu.memory_space<vmem>>, vector<128x128xbf16>
    %13 = arith.truncf %11 : vector<128x128xf32> to vector<128x128xbf16>
    %cst_9 = arith.constant dense<0.000000e+00> : vector<128x128xf32>
    %14 = tpu.matmul %12, %13, %cst_9 {dimension_numbers = #tpu.dot_dimension_numbers<[1], [0], [0], [1], [0, 0, 1, 1], [], []>} : vector<128x128xbf16>, vector<128x128xbf16>, vector<128x128xf32> -> vector<128x128xf32>
    %15 = vector.broadcast %4 : vector<1x128xf32> to vector<128x128xf32>
    %16 = arith.mulf %14, %15 : vector<128x128xf32>
    %17 = vector.broadcast %5 : vector<1x128xf32> to vector<128x128xf32>
    %18 = arith.addf %16, %17 : vector<128x128xf32>
    %cst_10 = arith.constant 0.000000e+00 : f32
    %19 = vector.broadcast %cst_10 : f32 to vector<128x128xf32>
    %20 = arith.maximumf %18, %19 : vector<128x128xf32>
    %c1_i32 = arith.constant 1 : i32
    %21 = arith.index_cast %c1_i32 : i32 to index
    %c0_11 = arith.constant 0 : index
    %c0_12 = arith.constant 0 : index
    %22 = vector.load %arg3[%21, %c0_11, %c0_12] : memref<6x3x128xf32, #tpu.memory_space<vmem>>, vector<1x3x128xf32>
    %23 = vector.shape_cast %22 : vector<1x3x128xf32> to vector<3x128xf32>
    %24 = vector.extract_strided_slice %23 {offsets = [0, 0], sizes = [1, 128], strides = [1, 1]} : vector<3x128xf32> to vector<1x128xf32>
    %25 = vector.extract_strided_slice %23 {offsets = [1, 0], sizes = [1, 128], strides = [1, 1]} : vector<3x128xf32> to vector<1x128xf32>
    %26 = vector.extract_strided_slice %23 {offsets = [2, 0], sizes = [1, 128], strides = [1, 1]} : vector<3x128xf32> to vector<1x128xf32>
    %27 = arith.truncf %20 : vector<128x128xf32> to vector<128x128xbf16>
    %28 = arith.index_cast %c1_i32 : i32 to index
    %c0_13 = arith.constant 0 : index
    %c0_14 = arith.constant 0 : index
    %29 = vector.load %arg2[%28, %c0_13, %c0_14] : memref<6x128x128xbf16, #tpu.memory_space<vmem>>, vector<1x128x128xbf16>
    %30 = vector.shape_cast %29 : vector<1x128x128xbf16> to vector<128x128xbf16>
    %cst_15 = arith.constant dense<0.000000e+00> : vector<128x128xf32>
    %31 = tpu.matmul %27, %30, %cst_15 {dimension_numbers = #tpu.dot_dimension_numbers<[1], [0], [0], [1], [0, 0, 1, 1], [], []>} : vector<128x128xbf16>, vector<128x128xbf16>, vector<128x128xf32> -> vector<128x128xf32>
    %32 = vector.broadcast %24 : vector<1x128xf32> to vector<128x128xf32>
    %33 = arith.addf %31, %32 : vector<128x128xf32>
    %c0_16 = arith.constant 0 : index
    %c0_17 = arith.constant 0 : index
    %34 = vector.load %arg1[%c0_16, %c0_17] : memref<128x128xbf16, #tpu.memory_space<vmem>>, vector<128x128xbf16>
    %35 = arith.truncf %33 : vector<128x128xf32> to vector<128x128xbf16>
    %cst_18 = arith.constant dense<0.000000e+00> : vector<128x128xf32>
    %36 = tpu.matmul %34, %35, %cst_18 {dimension_numbers = #tpu.dot_dimension_numbers<[1], [0], [0], [1], [0, 0, 1, 1], [], []>} : vector<128x128xbf16>, vector<128x128xbf16>, vector<128x128xf32> -> vector<128x128xf32>
    %37 = vector.broadcast %25 : vector<1x128xf32> to vector<128x128xf32>
    %38 = arith.mulf %36, %37 : vector<128x128xf32>
    %39 = vector.broadcast %26 : vector<1x128xf32> to vector<128x128xf32>
    %40 = arith.addf %38, %39 : vector<128x128xf32>
    %cst_19 = arith.constant 0.000000e+00 : f32
    %41 = vector.broadcast %cst_19 : f32 to vector<128x128xf32>
    %42 = arith.maximumf %40, %41 : vector<128x128xf32>
    %43 = arith.addf %42, %20 : vector<128x128xf32>
    %c2_i32 = arith.constant 2 : i32
    %44 = arith.index_cast %c2_i32 : i32 to index
    %c0_20 = arith.constant 0 : index
    %c0_21 = arith.constant 0 : index
    %45 = vector.load %arg3[%44, %c0_20, %c0_21] : memref<6x3x128xf32, #tpu.memory_space<vmem>>, vector<1x3x128xf32>
    %46 = vector.shape_cast %45 : vector<1x3x128xf32> to vector<3x128xf32>
    %47 = vector.extract_strided_slice %46 {offsets = [0, 0], sizes = [1, 128], strides = [1, 1]} : vector<3x128xf32> to vector<1x128xf32>
    %48 = vector.extract_strided_slice %46 {offsets = [1, 0], sizes = [1, 128], strides = [1, 1]} : vector<3x128xf32> to vector<1x128xf32>
    %49 = vector.extract_strided_slice %46 {offsets = [2, 0], sizes = [1, 128], strides = [1, 1]} : vector<3x128xf32> to vector<1x128xf32>
    %50 = arith.truncf %43 : vector<128x128xf32> to vector<128x128xbf16>
    %51 = arith.index_cast %c2_i32 : i32 to index
    %c0_22 = arith.constant 0 : index
    %c0_23 = arith.constant 0 : index
    %52 = vector.load %arg2[%51, %c0_22, %c0_23] : memref<6x128x128xbf16, #tpu.memory_space<vmem>>, vector<1x128x128xbf16>
    %53 = vector.shape_cast %52 : vector<1x128x128xbf16> to vector<128x128xbf16>
    %cst_24 = arith.constant dense<0.000000e+00> : vector<128x128xf32>
    %54 = tpu.matmul %50, %53, %cst_24 {dimension_numbers = #tpu.dot_dimension_numbers<[1], [0], [0], [1], [0, 0, 1, 1], [], []>} : vector<128x128xbf16>, vector<128x128xbf16>, vector<128x128xf32> -> vector<128x128xf32>
    %55 = vector.broadcast %47 : vector<1x128xf32> to vector<128x128xf32>
    %56 = arith.addf %54, %55 : vector<128x128xf32>
    %c0_25 = arith.constant 0 : index
    %c0_26 = arith.constant 0 : index
    %57 = vector.load %arg1[%c0_25, %c0_26] : memref<128x128xbf16, #tpu.memory_space<vmem>>, vector<128x128xbf16>
    %58 = arith.truncf %56 : vector<128x128xf32> to vector<128x128xbf16>
    %cst_27 = arith.constant dense<0.000000e+00> : vector<128x128xf32>
    %59 = tpu.matmul %57, %58, %cst_27 {dimension_numbers = #tpu.dot_dimension_numbers<[1], [0], [0], [1], [0, 0, 1, 1], [], []>} : vector<128x128xbf16>, vector<128x128xbf16>, vector<128x128xf32> -> vector<128x128xf32>
    %60 = vector.broadcast %48 : vector<1x128xf32> to vector<128x128xf32>
    %61 = arith.mulf %59, %60 : vector<128x128xf32>
    %62 = vector.broadcast %49 : vector<1x128xf32> to vector<128x128xf32>
    %63 = arith.addf %61, %62 : vector<128x128xf32>
    %cst_28 = arith.constant 0.000000e+00 : f32
    %64 = vector.broadcast %cst_28 : f32 to vector<128x128xf32>
    %65 = arith.maximumf %63, %64 : vector<128x128xf32>
    %66 = arith.addf %65, %43 : vector<128x128xf32>
    %c3_i32 = arith.constant 3 : i32
    %67 = arith.index_cast %c3_i32 : i32 to index
    %c0_29 = arith.constant 0 : index
    %c0_30 = arith.constant 0 : index
    %68 = vector.load %arg3[%67, %c0_29, %c0_30] : memref<6x3x128xf32, #tpu.memory_space<vmem>>, vector<1x3x128xf32>
    %69 = vector.shape_cast %68 : vector<1x3x128xf32> to vector<3x128xf32>
    %70 = vector.extract_strided_slice %69 {offsets = [0, 0], sizes = [1, 128], strides = [1, 1]} : vector<3x128xf32> to vector<1x128xf32>
    %71 = vector.extract_strided_slice %69 {offsets = [1, 0], sizes = [1, 128], strides = [1, 1]} : vector<3x128xf32> to vector<1x128xf32>
    %72 = vector.extract_strided_slice %69 {offsets = [2, 0], sizes = [1, 128], strides = [1, 1]} : vector<3x128xf32> to vector<1x128xf32>
    %73 = arith.truncf %66 : vector<128x128xf32> to vector<128x128xbf16>
    %74 = arith.index_cast %c3_i32 : i32 to index
    %c0_31 = arith.constant 0 : index
    %c0_32 = arith.constant 0 : index
    %75 = vector.load %arg2[%74, %c0_31, %c0_32] : memref<6x128x128xbf16, #tpu.memory_space<vmem>>, vector<1x128x128xbf16>
    %76 = vector.shape_cast %75 : vector<1x128x128xbf16> to vector<128x128xbf16>
    %cst_33 = arith.constant dense<0.000000e+00> : vector<128x128xf32>
    %77 = tpu.matmul %73, %76, %cst_33 {dimension_numbers = #tpu.dot_dimension_numbers<[1], [0], [0], [1], [0, 0, 1, 1], [], []>} : vector<128x128xbf16>, vector<128x128xbf16>, vector<128x128xf32> -> vector<128x128xf32>
    %78 = vector.broadcast %70 : vector<1x128xf32> to vector<128x128xf32>
    %79 = arith.addf %77, %78 : vector<128x128xf32>
    %c0_34 = arith.constant 0 : index
    %c0_35 = arith.constant 0 : index
    %80 = vector.load %arg1[%c0_34, %c0_35] : memref<128x128xbf16, #tpu.memory_space<vmem>>, vector<128x128xbf16>
    %81 = arith.truncf %79 : vector<128x128xf32> to vector<128x128xbf16>
    %cst_36 = arith.constant dense<0.000000e+00> : vector<128x128xf32>
    %82 = tpu.matmul %80, %81, %cst_36 {dimension_numbers = #tpu.dot_dimension_numbers<[1], [0], [0], [1], [0, 0, 1, 1], [], []>} : vector<128x128xbf16>, vector<128x128xbf16>, vector<128x128xf32> -> vector<128x128xf32>
    %83 = vector.broadcast %71 : vector<1x128xf32> to vector<128x128xf32>
    %84 = arith.mulf %82, %83 : vector<128x128xf32>
    %85 = vector.broadcast %72 : vector<1x128xf32> to vector<128x128xf32>
    %86 = arith.addf %84, %85 : vector<128x128xf32>
    %cst_37 = arith.constant 0.000000e+00 : f32
    %87 = vector.broadcast %cst_37 : f32 to vector<128x128xf32>
    %88 = arith.maximumf %86, %87 : vector<128x128xf32>
    %89 = arith.addf %88, %66 : vector<128x128xf32>
    %c4_i32 = arith.constant 4 : i32
    %90 = arith.index_cast %c4_i32 : i32 to index
    %c0_38 = arith.constant 0 : index
    %c0_39 = arith.constant 0 : index
    %91 = vector.load %arg3[%90, %c0_38, %c0_39] : memref<6x3x128xf32, #tpu.memory_space<vmem>>, vector<1x3x128xf32>
    %92 = vector.shape_cast %91 : vector<1x3x128xf32> to vector<3x128xf32>
    %93 = vector.extract_strided_slice %92 {offsets = [0, 0], sizes = [1, 128], strides = [1, 1]} : vector<3x128xf32> to vector<1x128xf32>
    %94 = vector.extract_strided_slice %92 {offsets = [1, 0], sizes = [1, 128], strides = [1, 1]} : vector<3x128xf32> to vector<1x128xf32>
    %95 = vector.extract_strided_slice %92 {offsets = [2, 0], sizes = [1, 128], strides = [1, 1]} : vector<3x128xf32> to vector<1x128xf32>
    %96 = arith.truncf %89 : vector<128x128xf32> to vector<128x128xbf16>
    %97 = arith.index_cast %c4_i32 : i32 to index
    %c0_40 = arith.constant 0 : index
    %c0_41 = arith.constant 0 : index
    %98 = vector.load %arg2[%97, %c0_40, %c0_41] : memref<6x128x128xbf16, #tpu.memory_space<vmem>>, vector<1x128x128xbf16>
    %99 = vector.shape_cast %98 : vector<1x128x128xbf16> to vector<128x128xbf16>
    %cst_42 = arith.constant dense<0.000000e+00> : vector<128x128xf32>
    %100 = tpu.matmul %96, %99, %cst_42 {dimension_numbers = #tpu.dot_dimension_numbers<[1], [0], [0], [1], [0, 0, 1, 1], [], []>} : vector<128x128xbf16>, vector<128x128xbf16>, vector<128x128xf32> -> vector<128x128xf32>
    %101 = vector.broadcast %93 : vector<1x128xf32> to vector<128x128xf32>
    %102 = arith.addf %100, %101 : vector<128x128xf32>
    %c0_43 = arith.constant 0 : index
    %c0_44 = arith.constant 0 : index
    %103 = vector.load %arg1[%c0_43, %c0_44] : memref<128x128xbf16, #tpu.memory_space<vmem>>, vector<128x128xbf16>
    %104 = arith.truncf %102 : vector<128x128xf32> to vector<128x128xbf16>
    %cst_45 = arith.constant dense<0.000000e+00> : vector<128x128xf32>
    %105 = tpu.matmul %103, %104, %cst_45 {dimension_numbers = #tpu.dot_dimension_numbers<[1], [0], [0], [1], [0, 0, 1, 1], [], []>} : vector<128x128xbf16>, vector<128x128xbf16>, vector<128x128xf32> -> vector<128x128xf32>
    %106 = vector.broadcast %94 : vector<1x128xf32> to vector<128x128xf32>
    %107 = arith.mulf %105, %106 : vector<128x128xf32>
    %108 = vector.broadcast %95 : vector<1x128xf32> to vector<128x128xf32>
    %109 = arith.addf %107, %108 : vector<128x128xf32>
    %cst_46 = arith.constant 0.000000e+00 : f32
    %110 = vector.broadcast %cst_46 : f32 to vector<128x128xf32>
    %111 = arith.maximumf %109, %110 : vector<128x128xf32>
    %112 = arith.addf %111, %89 : vector<128x128xf32>
    %c5_i32 = arith.constant 5 : i32
    %113 = arith.index_cast %c5_i32 : i32 to index
    %c0_47 = arith.constant 0 : index
    %c0_48 = arith.constant 0 : index
    %114 = vector.load %arg3[%113, %c0_47, %c0_48] : memref<6x3x128xf32, #tpu.memory_space<vmem>>, vector<1x3x128xf32>
    %115 = vector.shape_cast %114 : vector<1x3x128xf32> to vector<3x128xf32>
    %116 = vector.extract_strided_slice %115 {offsets = [0, 0], sizes = [1, 128], strides = [1, 1]} : vector<3x128xf32> to vector<1x128xf32>
    %117 = vector.extract_strided_slice %115 {offsets = [1, 0], sizes = [1, 128], strides = [1, 1]} : vector<3x128xf32> to vector<1x128xf32>
    %118 = vector.extract_strided_slice %115 {offsets = [2, 0], sizes = [1, 128], strides = [1, 1]} : vector<3x128xf32> to vector<1x128xf32>
    %119 = arith.truncf %112 : vector<128x128xf32> to vector<128x128xbf16>
    %120 = arith.index_cast %c5_i32 : i32 to index
    %c0_49 = arith.constant 0 : index
    %c0_50 = arith.constant 0 : index
    %121 = vector.load %arg2[%120, %c0_49, %c0_50] : memref<6x128x128xbf16, #tpu.memory_space<vmem>>, vector<1x128x128xbf16>
    %122 = vector.shape_cast %121 : vector<1x128x128xbf16> to vector<128x128xbf16>
    %cst_51 = arith.constant dense<0.000000e+00> : vector<128x128xf32>
    %123 = tpu.matmul %119, %122, %cst_51 {dimension_numbers = #tpu.dot_dimension_numbers<[1], [0], [0], [1], [0, 0, 1, 1], [], []>} : vector<128x128xbf16>, vector<128x128xbf16>, vector<128x128xf32> -> vector<128x128xf32>
    %124 = vector.broadcast %116 : vector<1x128xf32> to vector<128x128xf32>
    %125 = arith.addf %123, %124 : vector<128x128xf32>
    %c0_52 = arith.constant 0 : index
    %c0_53 = arith.constant 0 : index
    %126 = vector.load %arg1[%c0_52, %c0_53] : memref<128x128xbf16, #tpu.memory_space<vmem>>, vector<128x128xbf16>
    %127 = arith.truncf %125 : vector<128x128xf32> to vector<128x128xbf16>
    %cst_54 = arith.constant dense<0.000000e+00> : vector<128x128xf32>
    %128 = tpu.matmul %126, %127, %cst_54 {dimension_numbers = #tpu.dot_dimension_numbers<[1], [0], [0], [1], [0, 0, 1, 1], [], []>} : vector<128x128xbf16>, vector<128x128xbf16>, vector<128x128xf32> -> vector<128x128xf32>
    %129 = vector.broadcast %117 : vector<1x128xf32> to vector<128x128xf32>
    %130 = arith.mulf %128, %129 : vector<128x128xf32>
    %131 = vector.broadcast %118 : vector<1x128xf32> to vector<128x128xf32>
    %132 = arith.addf %130, %131 : vector<128x128xf32>
    %cst_55 = arith.constant 0.000000e+00 : f32
    %133 = vector.broadcast %cst_55 : f32 to vector<128x128xf32>
    %134 = arith.maximumf %132, %133 : vector<128x128xf32>
    %135 = arith.addf %134, %112 : vector<128x128xf32>
    %c5_i32_56 = arith.constant 5 : i32
    %c0_57 = arith.constant 0 : index
    %c0_58 = arith.constant 0 : index
    %136 = vector.load %arg4[%c0_57, %c0_58] : memref<128x128xf32, #tpu.memory_space<vmem>>, vector<128x128xf32>
    tpu.vector_store %arg4[%c0_57, %c0_58], %135 {strides = array<i32>} : memref<128x128xf32, #tpu.memory_space<vmem>>, vector<128x128xf32>,
    return
  }
}

</mosaic_0001>

<llo_original>
// kernel: gnn_encoder_forward.1
$region0: #{gnn_encoder_forward.1}
  #allocation0 [shape = 'u32[]', space=smem, size = 0x4, offset = 0x4, fixed_abs, tag = 'smem constant byte address 0x4 - core index']
  #allocation1 [shape = 'u32[144,128]{1,0:T(1,128)}', space=vmem, size = 0x12000, scoped, tag = 'internal scratch']
  %s0 = inlined_call_operand.hbm [shape: f32[128,128], index: 0, kind: input, shape index: {}]
  %s1 = inlined_call_operand.hbm [shape: bf16[128,128], index: 1, kind: input, shape index: {}]
  %s2 = inlined_call_operand.hbm [shape: bf16[6,128,128], index: 2, kind: input, shape index: {}]
  %s3 = inlined_call_operand.hbm [shape: f32[6,3,128], index: 3, kind: input, shape index: {}]
  %s4 = inlined_call_operand.hbm [shape: f32[128,128], index: 4, kind: output, shape index: {}]
  %s5 = sld [smem:[#allocation0]]
  $region42: #{gnn_encoder_forward.1} parent=0
    _
  %s7 = ssub.s32 1, %s5
  %s8 = scalar_select 0, %s7, %s5
  $region1: #{gnn_encoder_forward.1} parent=0
    #allocation2 [shape = 'u8[65536]{0}', space=vmem, size = 0x10000, scoped, tag = 'input window, operand 0, single buffered']
    #allocation3 [shape = 's32[1]{0}', space=sflag, size = 0x4, scoped, tag = 'scoped memory for gnn_encoder_forward.1']
    #allocation4 [shape = 's32[1]{0}', space=sflag, size = 0x4, scoped, tag = 'scoped memory for gnn_encoder_forward.1']
    #allocation5 [shape = 'u8[32768]{0}', space=vmem, size = 0x8000, scoped, tag = 'input window, operand 1, single buffered']
    #allocation6 [shape = 's32[1]{0}', space=sflag, size = 0x4, scoped, tag = 'scoped memory for gnn_encoder_forward.1']
    #allocation7 [shape = 'u8[196608]{0}', space=vmem, size = 0x30000, scoped, tag = 'input window, operand 2, single buffered']
    #allocation8 [shape = 'u8[12288]{0}', space=vmem, size = 0x3000, scoped, tag = 'input window, operand 3, single buffered']
    #allocation9 [shape = 's32[1]{0}', space=sflag, size = 0x4, scoped, tag = 'scoped memory for gnn_encoder_forward.1']
    #allocation10 [shape = 'u8[65536]{0}', space=vmem, size = 0x10000, scoped, tag = 'output window, operand 0, single buffered']
    %9 = vsyncpa [#allocation3], 0
    %10 = vsyncpa [#allocation6], 0
    %11 = vsyncpa [#allocation9], 0
    %12 = vsyncpa [#allocation4], 0
    // Predicated region
    $region2: #{gnn_encoder_forward.1} parent=1 // pred_check
      _
    $region3: #{gnn_encoder_forward.1} parent=1 // pred_check_branch
      %14 = sbr.rel (0) target = $region5
    $region4: #{gnn_encoder_forward.1} parent=1 // pred_region
      %s16 = ssub.s32 2048, 2048
      %17 = vsyncadd [#allocation3], %s16
      %s18 = sshll.u32 [#allocation2], 4
      %s19 = int_to_ptr.vmem [resolvable:$true] %s18
      %24 = dma.hbm_to_vmem [thread:$0]  %s0, 2048, %s19, [#allocation3], 128, 128, 8
    $region5: #{gnn_encoder_forward.1} parent=1 // pred_fallthru
      _
    // Predicated region
    $region6: #{gnn_encoder_forward.1} parent=1 // pred_check
      _
    $region7: #{gnn_encoder_forward.1} parent=1 // pred_check_branch
      %26 = sbr.rel (0) target = $region9
    $region8: #{gnn_encoder_forward.1} parent=1 // pred_region
      %s28 = ssub.s32 1024, 1024
      %29 = vsyncadd [#allocation6], %s28
      %s30 = sshll.u32 [#allocation5], 4
      %s31 = int_to_ptr.vmem [resolvable:$true] %s30
      %36 = dma.hbm_to_vmem [thread:$0]  %s1, 1024, %s31, [#allocation6], 64, 64, 4
    $region9: #{gnn_encoder_forward.1} parent=1 // pred_fallthru
      _
    // Predicated region
    $region10: #{gnn_encoder_forward.1} parent=1 // pred_check
      _
    $region11: #{gnn_encoder_forward.1} parent=1 // pred_check_branch
      %38 = sbr.rel (0) target = $region13
    $region12: #{gnn_encoder_forward.1} parent=1 // pred_region
      %s40 = ssub.s32 6144, 6144
      %41 = vsyncadd [#allocation6], %s40
      %s42 = sshll.u32 [#allocation7], 4
      %s43 = int_to_ptr.vmem [resolvable:$true] %s42
      %48 = dma.hbm_to_vmem [thread:$0]  %s2, 6144, %s43, [#allocation6], 64, 64, 4
    $region13: #{gnn_encoder_forward.1} parent=1 // pred_fallthru
      _
    // Predicated region
    $region14: #{gnn_encoder_forward.1} parent=1 // pred_check
      _
    $region15: #{gnn_encoder_forward.1} parent=1 // pred_check_branch
      %50 = sbr.rel (0) target = $region17
    $region16: #{gnn_encoder_forward.1} parent=1 // pred_region
      %s52 = ssub.s32 384, 384
      %53 = vsyncadd [#allocation9], %s52
      %s54 = sshll.u32 [#allocation8], 4
      %s55 = int_to_ptr.vmem [resolvable:$true] %s54
      %60 = dma.hbm_to_vmem [thread:$0]  %s3, 384, %s55, [#allocation9], 64, 64, 4
    $region17: #{gnn_encoder_forward.1} parent=1 // pred_fallthru
      _
    // Predicated region
    $region18: #{gnn_encoder_forward.1} parent=1 // pred_check
      _
    $region19: #{gnn_encoder_forward.1} parent=1 // pred_check_branch
      %62 = sbr.rel (0) target = $region21
    $region20: #{gnn_encoder_forward.1} parent=1 // pred_region
      %63 = dma.done [#allocation3], 2048
    $region21: #{gnn_encoder_forward.1} parent=1 // pred_fallthru
      _
    // Predicated region
    $region22: #{gnn_encoder_forward.1} parent=1 // pred_check
      _
    $region23: #{gnn_encoder_forward.1} parent=1 // pred_check_branch
      %65 = sbr.rel (0) target = $region25
    $region24: #{gnn_encoder_forward.1} parent=1 // pred_region
      %66 = dma.done [#allocation6], 1024
    $region25: #{gnn_encoder_forward.1} parent=1 // pred_fallthru
      _
    // Predicated region
    $region26: #{gnn_encoder_forward.1} parent=1 // pred_check
      _
    $region27: #{gnn_encoder_forward.1} parent=1 // pred_check_branch
      %68 = sbr.rel (0) target = $region29
    $region28: #{gnn_encoder_forward.1} parent=1 // pred_region
      %69 = dma.done [#allocation6], 6144
    $region29: #{gnn_encoder_forward.1} parent=1 // pred_fallthru
      _
    // Predicated region
    $region30: #{gnn_encoder_forward.1} parent=1 // pred_check
      _
    $region31: #{gnn_encoder_forward.1} parent=1 // pred_check_branch
      %71 = sbr.rel (0) target = $region33
    $region32: #{gnn_encoder_forward.1} parent=1 // pred_region
      %72 = dma.done [#allocation9], 384
    $region33: #{gnn_encoder_forward.1} parent=1 // pred_fallthru
      _
    %v74 = vld [vmem:[#allocation2] sm:$0xff]
    %v75 = vld [vmem:[#allocation2 + $0x8] sm:$0xff]
    %v76 = vld [vmem:[#allocation2 + $0x10] sm:$0xff]
    %v77 = vld [vmem:[#allocation2 + $0x18] sm:$0xff]
    %v78 = vld [vmem:[#allocation2 + $0x20] sm:$0xff]
    %v79 = vld [vmem:[#allocation2 + $0x28] sm:$0xff]
    %v80 = vld [vmem:[#allocation2 + $0x30] sm:$0xff]
    %v81 = vld [vmem:[#allocation2 + $0x38] sm:$0xff]
    %v82 = vld [vmem:[#allocation2 + $0x40] sm:$0xff]
    %v83 = vld [vmem:[#allocation2 + $0x48] sm:$0xff]
    %v84 = vld [vmem:[#allocation2 + $0x50] sm:$0xff]
    %v85 = vld [vmem:[#allocation2 + $0x58] sm:$0xff]
    %v86 = vld [vmem:[#allocation2 + $0x60] sm:$0xff]
    %v87 = vld [vmem:[#allocation2 + $0x68] sm:$0xff]
    %v88 = vld [vmem:[#allocation2 + $0x70] sm:$0xff]
    %v89 = vld [vmem:[#allocation2 + $0x78] sm:$0xff]
    %v90 = vld [vmem:[#allocation8] sm:$0x7]
    %v91 = vpack.c.bf16 %v75, %v74
    %v92 = vpack.c.bf16 %v77, %v76
    %v93 = vpack.c.bf16 %v79, %v78
    %v94 = vpack.c.bf16 %v81, %v80
    %v95 = vpack.c.bf16 %v83, %v82
    %v96 = vpack.c.bf16 %v85, %v84
    %v97 = vpack.c.bf16 %v87, %v86
    %v98 = vpack.c.bf16 %v89, %v88
    %v99 = vld [vmem:[#allocation7] sm:$0xf]
    %v100 = vld [vmem:[#allocation7 + $0x4] sm:$0xf]
    %v101 = vld [vmem:[#allocation7 + $0x8] sm:$0xf]
    %v102 = vld [vmem:[#allocation7 + $0xc] sm:$0xf]
    %v103 = vld [vmem:[#allocation7 + $0x10] sm:$0xf]
    %v104 = vld [vmem:[#allocation7 + $0x14] sm:$0xf]
    %v105 = vld [vmem:[#allocation7 + $0x18] sm:$0xf]
    %v106 = vld [vmem:[#allocation7 + $0x1c] sm:$0xf]
    %v107 = vld [vmem:[#allocation7 + $0x20] sm:$0xf]
    %v108 = vld [vmem:[#allocation7 + $0x24] sm:$0xf]
    %v109 = vld [vmem:[#allocation7 + $0x28] sm:$0xf]
    %v110 = vld [vmem:[#allocation7 + $0x2c] sm:$0xf]
    %v111 = vld [vmem:[#allocation7 + $0x30] sm:$0xf]
    %v112 = vld [vmem:[#allocation7 + $0x34] sm:$0xf]
    %v113 = vld [vmem:[#allocation7 + $0x38] sm:$0xf]
    %v114 = vld [vmem:[#allocation7 + $0x3c] sm:$0xf]
    %v115 = vlaneseq
    %v116 = vshrl.u32 %v115, 7
    %v117 = vsub.s32 0, %v116
    %v118 = vrot.slane %v90, %v117
    %v135 = vunpack.c.l.b16 %v99
    %v136 = vunpack.c.l.b16 %v100
    %v137 = vunpack.c.l.b16 %v101
    %v138 = vunpack.c.l.b16 %v102
    %v139 = vunpack.c.l.b16 %v103
    %v140 = vunpack.c.l.b16 %v104
    %v141 = vunpack.c.l.b16 %v105
    %v142 = vunpack.c.l.b16 %v106
    %v143 = vunpack.c.l.b16 %v107
    %v144 = vunpack.c.l.b16 %v108
    %v145 = vunpack.c.l.b16 %v109
    %v146 = vunpack.c.l.b16 %v110
    %v147 = vunpack.c.l.b16 %v111
    %v148 = vunpack.c.l.b16 %v112
    %v149 = vunpack.c.l.b16 %v113
    %v150 = vunpack.c.l.b16 %v114
    %v151 = vpack.c.b16 %v136, %v135
    %v152 = vpack.c.b16 %v138, %v137
    %v153 = vpack.c.b16 %v140, %v139
    %v154 = vpack.c.b16 %v142, %v141
    %v155 = vpack.c.b16 %v144, %v143
    %v156 = vpack.c.b16 %v146, %v145
    %v157 = vpack.c.b16 %v148, %v147
    %v158 = vpack.c.b16 %v150, %v149
    %167 = vmatprep.subr.bf16.mxu0 0
    %168 = vmatpush1.bf16.msra.mxu0 %v158
    %169 = vmatprep.subr.bf16.mxu0 0
    %170 = vmatpush1.bf16.msra.mxu0 %v157
    %171 = vmatprep.subr.bf16.mxu0 0
    %172 = vmatpush1.bf16.msra.mxu0 %v156
    %173 = vmatprep.subr.bf16.mxu0 0
    %174 = vmatpush1.bf16.msra.mxu0 %v155
    %175 = vmatprep.subr.bf16.mxu0 0
    %176 = vmatpush1.bf16.msra.mxu0 %v154
    %177 = vmatprep.subr.bf16.mxu0 0
    %178 = vmatpush1.bf16.msra.mxu0 %v153
    %179 = vmatprep.subr.bf16.mxu0 0
    %180 = vmatpush1.bf16.msra.mxu0 %v152
    %181 = vmatprep.subr.bf16.mxu0 0
    %182 = vmatpush1.bf16.msra.mxu0 %v151
    %183 = vmatprep.subr.bf16.mxu0 0
    %184 = vmatpush2.bf16.msra.mxu0 0
    %185 = vmatprep.subr.bf16.mxu0 0
    %186 = vmatpush2.bf16.msra.mxu0 0
    %187 = vmatprep.subr.bf16.mxu0 0
    %188 = vmatpush2.bf16.msra.mxu0 0
    %189 = vmatprep.subr.bf16.mxu0 0
    %190 = vmatpush2.bf16.msra.mxu0 0
    %191 = vmatprep.subr.bf16.mxu0 0
    %192 = vmatpush2.bf16.msra.mxu0 0
    %193 = vmatprep.subr.bf16.mxu0 0
    %194 = vmatpush2.bf16.msra.mxu0 0
    %195 = vmatprep.subr.bf16.mxu0 0
    %196 = vmatpush2.bf16.msra.mxu0 0
    %197 = vmatprep.subr.bf16.mxu0 0
    %198 = vmatpush2.bf16.msra.mxu0 0
    %199 = vmatprep.mubr.bf16.mxu0 0
    %200 = vmatmul.mubr.bf16.gmra.mxu0 %v91
    %v201 = vpop.f32.mrf.mxu0
    %v202 = vadd.f32 %v118, %v201
    %v203 = vpop.f32.mrf.mxu0
    %v204 = vpop.f32.mrf.mxu0
    %v205 = vadd.f32 %v118, %v204
    %v206 = vpop.f32.mrf.mxu0
    %207 = vmatprep.mubr.bf16.mxu0 0
    %208 = vmatmul.mubr.bf16.gmra.mxu0 %v92
    %v209 = vpop.f32.mrf.mxu0
    %v210 = vadd.f32 %v118, %v209
    %v211 = vpop.f32.mrf.mxu0
    %v212 = vpop.f32.mrf.mxu0
    %v213 = vadd.f32 %v118, %v212
    %v214 = vpop.f32.mrf.mxu0
    %215 = vmatprep.mubr.bf16.mxu0 0
    %216 = vmatmul.mubr.bf16.gmra.mxu0 %v93
    %v217 = vpop.f32.mrf.mxu0
    %v218 = vadd.f32 %v118, %v217
    %v219 = vpop.f32.mrf.mxu0
    %v220 = vpop.f32.mrf.mxu0
    %v221 = vadd.f32 %v118, %v220
    %v222 = vpop.f32.mrf.mxu0
    %223 = vmatprep.mubr.bf16.mxu0 0
    %224 = vmatmul.mubr.bf16.gmra.mxu0 %v94
    %v225 = vpop.f32.mrf.mxu0
    %v226 = vadd.f32 %v118, %v225
    %v227 = vpop.f32.mrf.mxu0
    %v228 = vpop.f32.mrf.mxu0
    %v229 = vadd.f32 %v118, %v228
    %v230 = vpop.f32.mrf.mxu0
    %231 = vmatprep.mubr.bf16.mxu0 0
    %232 = vmatmul.mubr.bf16.gmra.mxu0 %v95
    %v233 = vpop.f32.mrf.mxu0
    %v234 = vadd.f32 %v118, %v233
    %v235 = vpop.f32.mrf.mxu0
    %v236 = vpop.f32.mrf.mxu0
    %v237 = vadd.f32 %v118, %v236
    %v238 = vpop.f32.mrf.mxu0
    %239 = vmatprep.mubr.bf16.mxu0 0
    %240 = vmatmul.mubr.bf16.gmra.mxu0 %v96
    %v241 = vpop.f32.mrf.mxu0
    %v242 = vadd.f32 %v118, %v241
    %v243 = vpop.f32.mrf.mxu0
    %v244 = vpop.f32.mrf.mxu0
    %v245 = vadd.f32 %v118, %v244
    %v246 = vpop.f32.mrf.mxu0
    %247 = vmatprep.mubr.bf16.mxu0 0
    %248 = vmatmul.mubr.bf16.gmra.mxu0 %v97
    %v249 = vpop.f32.mrf.mxu0
    %v250 = vadd.f32 %v118, %v249
    %v251 = vpop.f32.mrf.mxu0
    %v252 = vpop.f32.mrf.mxu0
    %v253 = vadd.f32 %v118, %v252
    %v254 = vpop.f32.mrf.mxu0
    %255 = vmatprep.mubr.bf16.mxu0 0
    %256 = vmatmul.mubr.bf16.gmra.mxu0 %v98
    %v257 = vpop.f32.mrf.mxu0
    %v258 = vadd.f32 %v118, %v257
    %v259 = vpop.f32.mrf.mxu0
    %v260 = vpop.f32.mrf.mxu0
    %v261 = vadd.f32 %v118, %v260
    %v262 = vpop.f32.mrf.mxu0
    %263 = vdwg.mxu0
    %v264 = vld [vmem:[#allocation5] sm:$0xf]
    %v265 = vld [vmem:[#allocation5 + $0x4] sm:$0xf]
    %v266 = vld [vmem:[#allocation5 + $0x8] sm:$0xf]
    %v267 = vld [vmem:[#allocation5 + $0xc] sm:$0xf]
    %v268 = vld [vmem:[#allocation5 + $0x10] sm:$0xf]
    %v269 = vld [vmem:[#allocation5 + $0x14] sm:$0xf]
    %v270 = vld [vmem:[#allocation5 + $0x18] sm:$0xf]
    %v271 = vld [vmem:[#allocation5 + $0x1c] sm:$0xf]
    %v272 = vld [vmem:[#allocation5 + $0x20] sm:$0xf]
    %v273 = vld [vmem:[#allocation5 + $0x24] sm:$0xf]
    %v274 = vld [vmem:[#allocation5 + $0x28] sm:$0xf]
    %v275 = vld [vmem:[#allocation5 + $0x2c] sm:$0xf]
    %v276 = vld [vmem:[#allocation5 + $0x30] sm:$0xf]
    %v277 = vld [vmem:[#allocation5 + $0x34] sm:$0xf]
    %v278 = vld [vmem:[#allocation5 + $0x38] sm:$0xf]
    %v279 = vld [vmem:[#allocation5 + $0x3c] sm:$0xf]
    %v280 = vpack.c.bf16 %v205, %v202
    %v281 = vpack.c.bf16 %v213, %v210
    %v282 = vpack.c.bf16 %v221, %v218
    %v283 = vpack.c.bf16 %v229, %v226
    %v284 = vpack.c.bf16 %v237, %v234
    %v285 = vpack.c.bf16 %v245, %v242
    %v286 = vpack.c.bf16 %v253, %v250
    %v287 = vpack.c.bf16 %v261, %v258
    %v304 = vunpack.c.l.b16 %v264
    %v305 = vunpack.c.l.b16 %v265
    %v306 = vunpack.c.l.b16 %v266
    %v307 = vunpack.c.l.b16 %v267
    %v308 = vunpack.c.l.b16 %v268
    %v309 = vunpack.c.l.b16 %v269
    %v310 = vunpack.c.l.b16 %v270
    %v311 = vunpack.c.l.b16 %v271
    %v312 = vunpack.c.l.b16 %v272
    %v313 = vunpack.c.l.b16 %v273
    %v314 = vunpack.c.l.b16 %v274
    %v315 = vunpack.c.l.b16 %v275
    %v316 = vunpack.c.l.b16 %v276
    %v317 = vunpack.c.l.b16 %v277
    %v318 = vunpack.c.l.b16 %v278
    %v319 = vunpack.c.l.b16 %v279
    %v320 = vpack.c.b16 %v305, %v304
    %v321 = vpack.c.b16 %v307, %v306
    %v322 = vpack.c.b16 %v309, %v308
    %v323 = vpack.c.b16 %v311, %v310
    %v324 = vpack.c.b16 %v313, %v312
    %v325 = vpack.c.b16 %v315, %v314
    %v326 = vpack.c.b16 %v317, %v316
    %v327 = vpack.c.b16 %v319, %v318
    %336 = vmatprep.subr.bf16.mxu0 0
    %337 = vmatpush1.bf16.msra.mxu0 %v287
    %338 = vmatprep.subr.bf16.mxu0 0
    %339 = vmatpush1.bf16.msra.mxu0 %v286
    %340 = vmatprep.subr.bf16.mxu0 0
    %341 = vmatpush1.bf16.msra.mxu0 %v285
    %342 = vmatprep.subr.bf16.mxu0 0
    %343 = vmatpush1.bf16.msra.mxu0 %v284
    %344 = vmatprep.subr.bf16.mxu0 0
    %345 = vmatpush1.bf16.msra.mxu0 %v283
    %346 = vmatprep.subr.bf16.mxu0 0
    %347 = vmatpush1.bf16.msra.mxu0 %v282
    %348 = vmatprep.subr.bf16.mxu0 0
    %349 = vmatpush1.bf16.msra.mxu0 %v281
    %350 = vmatprep.subr.bf16.mxu0 0
    %351 = vmatpush1.bf16.msra.mxu0 %v280
    %352 = vmatprep.subr.bf16.mxu0 0
    %353 = vmatpush2.bf16.msra.mxu0 0
    %354 = vmatprep.subr.bf16.mxu0 0
    %355 = vmatpush2.bf16.msra.mxu0 0
    %356 = vmatprep.subr.bf16.mxu0 0
    %357 = vmatpush2.bf16.msra.mxu0 0
    %358 = vmatprep.subr.bf16.mxu0 0
    %359 = vmatpush2.bf16.msra.mxu0 0
    %360 = vmatprep.subr.bf16.mxu0 0
    %361 = vmatpush2.bf16.msra.mxu0 0
    %362 = vmatprep.subr.bf16.mxu0 0
    %363 = vmatpush2.bf16.msra.mxu0 0
    %364 = vmatprep.subr.bf16.mxu0 0
    %365 = vmatpush2.bf16.msra.mxu0 0
    %366 = vmatprep.subr.bf16.mxu0 0
    %367 = vmatpush2.bf16.msra.mxu0 0
    %368 = vmatprep.mubr.bf16.mxu0 0
    %369 = vmatmul.mubr.bf16.gmra.mxu0 %v320
    %v370 = vpop.f32.mrf.mxu0
    %v371 = vadd.f32 0.0, %v370
    %v372 = vpop.f32.mrf.mxu0
    %v373 = vpop.f32.mrf.mxu0
    %v374 = vadd.f32 0.0, %v373
    %v375 = vpop.f32.mrf.mxu0
    %376 = vmatprep.mubr.bf16.mxu0 0
    %377 = vmatmul.mubr.bf16.gmra.mxu0 %v321
    %v378 = vpop.f32.mrf.mxu0
    %v379 = vadd.f32 0.0, %v378
    %v380 = vpop.f32.mrf.mxu0
    %v381 = vpop.f32.mrf.mxu0
    %v382 = vadd.f32 0.0, %v381
    %v383 = vpop.f32.mrf.mxu0
    %384 = vmatprep.mubr.bf16.mxu0 0
    %385 = vmatmul.mubr.bf16.gmra.mxu0 %v322
    %v386 = vpop.f32.mrf.mxu0
    %v387 = vadd.f32 0.0, %v386
    %v388 = vpop.f32.mrf.mxu0
    %v389 = vpop.f32.mrf.mxu0
    %v390 = vadd.f32 0.0, %v389
    %v391 = vpop.f32.mrf.mxu0
    %392 = vmatprep.mubr.bf16.mxu0 0
    %393 = vmatmul.mubr.bf16.gmra.mxu0 %v323
    %v394 = vpop.f32.mrf.mxu0
    %v395 = vadd.f32 0.0, %v394
    %v396 = vpop.f32.mrf.mxu0
    %v397 = vpop.f32.mrf.mxu0
    %v398 = vadd.f32 0.0, %v397
    %v399 = vpop.f32.mrf.mxu0
    %400 = vmatprep.mubr.bf16.mxu0 0
    %401 = vmatmul.mubr.bf16.gmra.mxu0 %v324
    %v402 = vpop.f32.mrf.mxu0
    %v403 = vadd.f32 0.0, %v402
    %v404 = vpop.f32.mrf.mxu0
    %v405 = vpop.f32.mrf.mxu0
    %v406 = vadd.f32 0.0, %v405
    %v407 = vpop.f32.mrf.mxu0
    %408 = vmatprep.mubr.bf16.mxu0 0
    %409 = vmatmul.mubr.bf16.gmra.mxu0 %v325
    %v410 = vpop.f32.mrf.mxu0
    %v411 = vadd.f32 0.0, %v410
    %v412 = vpop.f32.mrf.mxu0
    %v413 = vpop.f32.mrf.mxu0
    %v414 = vadd.f32 0.0, %v413
    %v415 = vpop.f32.mrf.mxu0
    %416 = vmatprep.mubr.bf16.mxu0 0
    %417 = vmatmul.mubr.bf16.gmra.mxu0 %v326
    %v418 = vpop.f32.mrf.mxu0
    %v419 = vadd.f32 0.0, %v418
    %v420 = vpop.f32.mrf.mxu0
    %v421 = vpop.f32.mrf.mxu0
    %v422 = vadd.f32 0.0, %v421
    %v423 = vpop.f32.mrf.mxu0
    %424 = vmatprep.mubr.bf16.mxu0 0
    %425 = vmatmul.mubr.bf16.gmra.mxu0 %v327
    %v426 = vpop.f32.mrf.mxu0
    %v427 = vadd.f32 0.0, %v426
    %v428 = vpop.f32.mrf.mxu0
    %v429 = vpop.f32.mrf.mxu0
    %v430 = vadd.f32 0.0, %v429
    %v431 = vpop.f32.mrf.mxu0
    %432 = vdwg.mxu0
    %v433 = vlaneseq
    %v434 = vshrl.u32 %v433, 7
    %v435 = vsub.s32 1, %v434
    %v436 = vrot.slane %v90, %v435
    %v437 = vmul.f32 %v371, %v436
    %v438 = vmul.f32 %v374, %v436
    %v439 = vmul.f32 %v379, %v436
    %v440 = vmul.f32 %v382, %v436
    %v441 = vmul.f32 %v387, %v436
    %v442 = vmul.f32 %v390, %v436
    %v443 = vmul.f32 %v395, %v436
    %v444 = vmul.f32 %v398, %v436
    %v445 = vmul.f32 %v403, %v436
    %v446 = vmul.f32 %v406, %v436
    %v447 = vmul.f32 %v411, %v436
    %v448 = vmul.f32 %v414, %v436
    %v449 = vmul.f32 %v419, %v436
    %v450 = vmul.f32 %v422, %v436
    %v451 = vmul.f32 %v427, %v436
    %v452 = vmul.f32 %v430, %v436
    %v453 = vlaneseq
    %v454 = vshrl.u32 %v453, 7
    %v455 = vsub.s32 2, %v454
    %v456 = vrot.slane %v90, %v455
    %v457 = vadd.f32 %v437, %v456
    %v458 = vadd.f32 %v438, %v456
    %v459 = vadd.f32 %v439, %v456
    %v460 = vadd.f32 %v440, %v456
    %v461 = vadd.f32 %v441, %v456
    %v462 = vadd.f32 %v442, %v456
    %v463 = vadd.f32 %v443, %v456
    %v464 = vadd.f32 %v444, %v456
    %v465 = vadd.f32 %v445, %v456
    %v466 = vadd.f32 %v446, %v456
    %v467 = vadd.f32 %v447, %v456
    %v468 = vadd.f32 %v448, %v456
    %v469 = vadd.f32 %v449, %v456
    %v470 = vadd.f32 %v450, %v456
    %v471 = vadd.f32 %v451, %v456
    %v472 = vadd.f32 %v452, %v456
    %v473 = vmax.f32 %v457, 0.0
    %v474 = vmax.f32 %v458, 0.0
    %v475 = vmax.f32 %v459, 0.0
    %v476 = vmax.f32 %v460, 0.0
    %v477 = vmax.f32 %v461, 0.0
    %v478 = vmax.f32 %v462, 0.0
    %v479 = vmax.f32 %v463, 0.0
    %v480 = vmax.f32 %v464, 0.0
    %v481 = vmax.f32 %v465, 0.0
    %v482 = vmax.f32 %v466, 0.0
    %v483 = vmax.f32 %v467, 0.0
    %v484 = vmax.f32 %v468, 0.0
    %v485 = vmax.f32 %v469, 0.0
    %v486 = vmax.f32 %v470, 0.0
    %v487 = vmax.f32 %v471, 0.0
    %v488 = vmax.f32 %v472, 0.0
    %s489 = scalar_lea.vmem [#allocation8], 4
    %v490 = vld [vmem:[%s489] sm:$0x7]
    %v491 = vpack.c.bf16 %v474, %v473
    %v492 = vpack.c.bf16 %v476, %v475
    %v493 = vpack.c.bf16 %v478, %v477
    %v494 = vpack.c.bf16 %v480, %v479
    %v495 = vpack.c.bf16 %v482, %v481
    %v496 = vpack.c.bf16 %v484, %v483
    %v497 = vpack.c.bf16 %v486, %v485
    %v498 = vpack.c.bf16 %v488, %v487
    %s499 = scalar_lea.vmem [#allocation7], 64
    %v500 = vld [vmem:[%s499] sm:$0xf]
    %v501 = vld [vmem:[%s499 + $0x4] sm:$0xf]
    %v502 = vld [vmem:[%s499 + $0x8] sm:$0xf]
    %v503 = vld [vmem:[%s499 + $0xc] sm:$0xf]
    %v504 = vld [vmem:[%s499 + $0x10] sm:$0xf]
    %v505 = vld [vmem:[%s499 + $0x14] sm:$0xf]
    %v506 = vld [vmem:[%s499 + $0x18] sm:$0xf]
    %v507 = vld [vmem:[%s499 + $0x1c] sm:$0xf]
    %v508 = vld [vmem:[%s499 + $0x20] sm:$0xf]
    %v509 = vld [vmem:[%s499 + $0x24] sm:$0xf]
    %v510 = vld [vmem:[%s499 + $0x28] sm:$0xf]
    %v511 = vld [vmem:[%s499 + $0x2c] sm:$0xf]
    %v512 = vld [vmem:[%s499 + $0x30] sm:$0xf]
    %v513 = vld [vmem:[%s499 + $0x34] sm:$0xf]
    %v514 = vld [vmem:[%s499 + $0x38] sm:$0xf]
    %v515 = vld [vmem:[%s499 + $0x3c] sm:$0xf]
    %v516 = vlaneseq
    %v517 = vshrl.u32 %v516, 7
    %v518 = vsub.s32 0, %v517
    %v519 = vrot.slane %v490, %v518
    %v536 = vunpack.c.l.b16 %v500
    %v537 = vunpack.c.l.b16 %v501
    %v538 = vunpack.c.l.b16 %v502
    %v539 = vunpack.c.l.b16 %v503
    %v540 = vunpack.c.l.b16 %v504
    %v541 = vunpack.c.l.b16 %v505
    %v542 = vunpack.c.l.b16 %v506
    %v543 = vunpack.c.l.b16 %v507
    %v544 = vunpack.c.l.b16 %v508
    %v545 = vunpack.c.l.b16 %v509
    %v546 = vunpack.c.l.b16 %v510
    %v547 = vunpack.c.l.b16 %v511
    %v548 = vunpack.c.l.b16 %v512
    %v549 = vunpack.c.l.b16 %v513
    %v550 = vunpack.c.l.b16 %v514
    %v551 = vunpack.c.l.b16 %v515
    %v552 = vpack.c.b16 %v537, %v536
    %v553 = vpack.c.b16 %v539, %v538
    %v554 = vpack.c.b16 %v541, %v540
    %v555 = vpack.c.b16 %v543, %v542
    %v556 = vpack.c.b16 %v545, %v544
    %v557 = vpack.c.b16 %v547, %v546
    %v558 = vpack.c.b16 %v549, %v548
    %v559 = vpack.c.b16 %v551, %v550
    %568 = vmatprep.subr.bf16.mxu0 0
    %569 = vmatpush1.bf16.msra.mxu0 %v559
    %570 = vmatprep.subr.bf16.mxu0 0
    %571 = vmatpush1.bf16.msra.mxu0 %v558
    %572 = vmatprep.subr.bf16.mxu0 0
    %573 = vmatpush1.bf16.msra.mxu0 %v557
    %574 = vmatprep.subr.bf16.mxu0 0
    %575 = vmatpush1.bf16.msra.mxu0 %v556
    %576 = vmatprep.subr.bf16.mxu0 0
    %577 = vmatpush1.bf16.msra.mxu0 %v555
    %578 = vmatprep.subr.bf16.mxu0 0
    %579 = vmatpush1.bf16.msra.mxu0 %v554
    %580 = vmatprep.subr.bf16.mxu0 0
    %581 = vmatpush1.bf16.msra.mxu0 %v553
    %582 = vmatprep.subr.bf16.mxu0 0
    %583 = vmatpush1.bf16.msra.mxu0 %v552
    %584 = vmatprep.subr.bf16.mxu0 0
    %585 = vmatpush2.bf16.msra.mxu0 0
    %586 = vmatprep.subr.bf16.mxu0 0
    %587 = vmatpush2.bf16.msra.mxu0 0
    %588 = vmatprep.subr.bf16.mxu0 0
    %589 = vmatpush2.bf16.msra.mxu0 0
    %590 = vmatprep.subr.bf16.mxu0 0
    %591 = vmatpush2.bf16.msra.mxu0 0
    %592 = vmatprep.subr.bf16.mxu0 0
    %593 = vmatpush2.bf16.msra.mxu0 0
    %594 = vmatprep.subr.bf16.mxu0 0
    %595 = vmatpush2.bf16.msra.mxu0 0
    %596 = vmatprep.subr.bf16.mxu0 0
    %597 = vmatpush2.bf16.msra.mxu0 0
    %598 = vmatprep.subr.bf16.mxu0 0
    %599 = vmatpush2.bf16.msra.mxu0 0
    %600 = vmatprep.mubr.bf16.mxu0 0
    %601 = vmatmul.mubr.bf16.gmra.mxu0 %v491
    %v602 = vpop.f32.mrf.mxu0
    %v603 = vadd.f32 %v519, %v602
    %v604 = vpop.f32.mrf.mxu0
    %v605 = vpop.f32.mrf.mxu0
    %v606 = vadd.f32 %v519, %v605
    %v607 = vpop.f32.mrf.mxu0
    %608 = vmatprep.mubr.bf16.mxu0 0
    %609 = vmatmul.mubr.bf16.gmra.mxu0 %v492
    %v610 = vpop.f32.mrf.mxu0
    %v611 = vadd.f32 %v519, %v610
    %v612 = vpop.f32.mrf.mxu0
    %v613 = vpop.f32.mrf.mxu0
    %v614 = vadd.f32 %v519, %v613
    %v615 = vpop.f32.mrf.mxu0
    %616 = vmatprep.mubr.bf16.mxu0 0
    %617 = vmatmul.mubr.bf16.gmra.mxu0 %v493
    %v618 = vpop.f32.mrf.mxu0
    %v619 = vadd.f32 %v519, %v618
    %v620 = vpop.f32.mrf.mxu0
    %v621 = vpop.f32.mrf.mxu0
    %v622 = vadd.f32 %v519, %v621
    %v623 = vpop.f32.mrf.mxu0
    %624 = vmatprep.mubr.bf16.mxu0 0
    %625 = vmatmul.mubr.bf16.gmra.mxu0 %v494
    %v626 = vpop.f32.mrf.mxu0
    %v627 = vadd.f32 %v519, %v626
    %v628 = vpop.f32.mrf.mxu0
    %v629 = vpop.f32.mrf.mxu0
    %v630 = vadd.f32 %v519, %v629
    %v631 = vpop.f32.mrf.mxu0
    %632 = vmatprep.mubr.bf16.mxu0 0
    %633 = vmatmul.mubr.bf16.gmra.mxu0 %v495
    %v634 = vpop.f32.mrf.mxu0
    %v635 = vadd.f32 %v519, %v634
    %v636 = vpop.f32.mrf.mxu0
    %v637 = vpop.f32.mrf.mxu0
    %v638 = vadd.f32 %v519, %v637
    %v639 = vpop.f32.mrf.mxu0
    %640 = vmatprep.mubr.bf16.mxu0 0
    %641 = vmatmul.mubr.bf16.gmra.mxu0 %v496
    %v642 = vpop.f32.mrf.mxu0
    %v643 = vadd.f32 %v519, %v642
    %v644 = vpop.f32.mrf.mxu0
    %v645 = vpop.f32.mrf.mxu0
    %v646 = vadd.f32 %v519, %v645
    %v647 = vpop.f32.mrf.mxu0
    %648 = vmatprep.mubr.bf16.mxu0 0
    %649 = vmatmul.mubr.bf16.gmra.mxu0 %v497
    %v650 = vpop.f32.mrf.mxu0
    %v651 = vadd.f32 %v519, %v650
    %v652 = vpop.f32.mrf.mxu0
    %v653 = vpop.f32.mrf.mxu0
    %v654 = vadd.f32 %v519, %v653
    %v655 = vpop.f32.mrf.mxu0
    %656 = vmatprep.mubr.bf16.mxu0 0
    %657 = vmatmul.mubr.bf16.gmra.mxu0 %v498
    %v658 = vpop.f32.mrf.mxu0
    %v659 = vadd.f32 %v519, %v658
    %v660 = vpop.f32.mrf.mxu0
    %v661 = vpop.f32.mrf.mxu0
    %v662 = vadd.f32 %v519, %v661
    %v663 = vpop.f32.mrf.mxu0
    %664 = vdwg.mxu0
    %v665 = vpack.c.bf16 %v606, %v603
    %v666 = vpack.c.bf16 %v614, %v611
    %v667 = vpack.c.bf16 %v622, %v619
    %v668 = vpack.c.bf16 %v630, %v627
    %v669 = vpack.c.bf16 %v638, %v635
    %v670 = vpack.c.bf16 %v646, %v643
    %v671 = vpack.c.bf16 %v654, %v651
    %v672 = vpack.c.bf16 %v662, %v659
    %673 = vmatprep.subr.bf16.mxu0 0
    %674 = vmatpush1.bf16.msra.mxu0 %v672
    %675 = vmatprep.subr.bf16.mxu0 0
    %676 = vmatpush1.bf16.msra.mxu0 %v671
    %677 = vmatprep.subr.bf16.mxu0 0
    %678 = vmatpush1.bf16.msra.mxu0 %v670
    %679 = vmatprep.subr.bf16.mxu0 0
    %680 = vmatpush1.bf16.msra.mxu0 %v669
    %681 = vmatprep.subr.bf16.mxu0 0
    %682 = vmatpush1.bf16.msra.mxu0 %v668
    %683 = vmatprep.subr.bf16.mxu0 0
    %684 = vmatpush1.bf16.msra.mxu0 %v667
    %685 = vmatprep.subr.bf16.mxu0 0
    %686 = vmatpush1.bf16.msra.mxu0 %v666
    %687 = vmatprep.subr.bf16.mxu0 0
    %688 = vmatpush1.bf16.msra.mxu0 %v665
    %689 = vmatprep.subr.bf16.mxu0 0
    %690 = vmatpush2.bf16.msra.mxu0 0
    %691 = vmatprep.subr.bf16.mxu0 0
    %692 = vmatpush2.bf16.msra.mxu0 0
    %693 = vmatprep.subr.bf16.mxu0 0
    %694 = vmatpush2.bf16.msra.mxu0 0
    %695 = vmatprep.subr.bf16.mxu0 0
    %696 = vmatpush2.bf16.msra.mxu0 0
    %697 = vmatprep.subr.bf16.mxu0 0
    %698 = vmatpush2.bf16.msra.mxu0 0
    %699 = vmatprep.subr.bf16.mxu0 0
    %700 = vmatpush2.bf16.msra.mxu0 0
    %701 = vmatprep.subr.bf16.mxu0 0
    %702 = vmatpush2.bf16.msra.mxu0 0
    %703 = vmatprep.subr.bf16.mxu0 0
    %704 = vmatpush2.bf16.msra.mxu0 0
    %705 = vmatprep.mubr.bf16.mxu0 0
    %706 = vmatmul.mubr.bf16.gmra.mxu0 %v320
    %v707 = vpop.f32.mrf.mxu0
    %v708 = vadd.f32 0.0, %v707
    %v709 = vpop.f32.mrf.mxu0
    %v710 = vpop.f32.mrf.mxu0
    %v711 = vadd.f32 0.0, %v710
    %v712 = vpop.f32.mrf.mxu0
    %713 = vmatprep.mubr.bf16.mxu0 0
    %714 = vmatmul.mubr.bf16.gmra.mxu0 %v321
    %v715 = vpop.f32.mrf.mxu0
    %v716 = vadd.f32 0.0, %v715
    %v717 = vpop.f32.mrf.mxu0
    %v718 = vpop.f32.mrf.mxu0
    %v719 = vadd.f32 0.0, %v718
    %v720 = vpop.f32.mrf.mxu0
    %721 = vmatprep.mubr.bf16.mxu0 0
    %722 = vmatmul.mubr.bf16.gmra.mxu0 %v322
    %v723 = vpop.f32.mrf.mxu0
    %v724 = vadd.f32 0.0, %v723
    %v725 = vpop.f32.mrf.mxu0
    %v726 = vpop.f32.mrf.mxu0
    %v727 = vadd.f32 0.0, %v726
    %v728 = vpop.f32.mrf.mxu0
    %729 = vmatprep.mubr.bf16.mxu0 0
    %730 = vmatmul.mubr.bf16.gmra.mxu0 %v323
    %v731 = vpop.f32.mrf.mxu0
    %v732 = vadd.f32 0.0, %v731
    %v733 = vpop.f32.mrf.mxu0
    %v734 = vpop.f32.mrf.mxu0
    %v735 = vadd.f32 0.0, %v734
    %v736 = vpop.f32.mrf.mxu0
    %737 = vmatprep.mubr.bf16.mxu0 0
    %738 = vmatmul.mubr.bf16.gmra.mxu0 %v324
    %v739 = vpop.f32.mrf.mxu0
    %v740 = vadd.f32 0.0, %v739
    %v741 = vpop.f32.mrf.mxu0
    %v742 = vpop.f32.mrf.mxu0
    %v743 = vadd.f32 0.0, %v742
    %v744 = vpop.f32.mrf.mxu0
    %745 = vmatprep.mubr.bf16.mxu0 0
    %746 = vmatmul.mubr.bf16.gmra.mxu0 %v325
    %v747 = vpop.f32.mrf.mxu0
    %v748 = vadd.f32 0.0, %v747
    %v749 = vpop.f32.mrf.mxu0
    %v750 = vpop.f32.mrf.mxu0
    %v751 = vadd.f32 0.0, %v750
    %v752 = vpop.f32.mrf.mxu0
    %753 = vmatprep.mubr.bf16.mxu0 0
    %754 = vmatmul.mubr.bf16.gmra.mxu0 %v326
    %v755 = vpop.f32.mrf.mxu0
    %v756 = vadd.f32 0.0, %v755
    %v757 = vpop.f32.mrf.mxu0
    %v758 = vpop.f32.mrf.mxu0
    %v759 = vadd.f32 0.0, %v758
    %v760 = vpop.f32.mrf.mxu0
    %761 = vmatprep.mubr.bf16.mxu0 0
    %762 = vmatmul.mubr.bf16.gmra.mxu0 %v327
    %v763 = vpop.f32.mrf.mxu0
    %v764 = vadd.f32 0.0, %v763
    %v765 = vpop.f32.mrf.mxu0
    %v766 = vpop.f32.mrf.mxu0
    %v767 = vadd.f32 0.0, %v766
    %v768 = vpop.f32.mrf.mxu0
    %769 = vdwg.mxu0
    %v770 = vlaneseq
    %v771 = vshrl.u32 %v770, 7
    %v772 = vsub.s32 1, %v771
    %v773 = vrot.slane %v490, %v772
    %v774 = vmul.f32 %v708, %v773
    %v775 = vmul.f32 %v711, %v773
    %v776 = vmul.f32 %v716, %v773
    %v777 = vmul.f32 %v719, %v773
    %v778 = vmul.f32 %v724, %v773
    %v779 = vmul.f32 %v727, %v773
    %v780 = vmul.f32 %v732, %v773
    %v781 = vmul.f32 %v735, %v773
    %v782 = vmul.f32 %v740, %v773
    %v783 = vmul.f32 %v743, %v773
    %v784 = vmul.f32 %v748, %v773
    %v785 = vmul.f32 %v751, %v773
    %v786 = vmul.f32 %v756, %v773
    %v787 = vmul.f32 %v759, %v773
    %v788 = vmul.f32 %v764, %v773
    %v789 = vmul.f32 %v767, %v773
    %v790 = vlaneseq
    %v791 = vshrl.u32 %v790, 7
    %v792 = vsub.s32 2, %v791
    %v793 = vrot.slane %v490, %v792
    %v794 = vadd.f32 %v774, %v793
    %v795 = vadd.f32 %v775, %v793
    %v796 = vadd.f32 %v776, %v793
    %v797 = vadd.f32 %v777, %v793
    %v798 = vadd.f32 %v778, %v793
    %v799 = vadd.f32 %v779, %v793
    %v800 = vadd.f32 %v780, %v793
    %v801 = vadd.f32 %v781, %v793
    %v802 = vadd.f32 %v782, %v793
    %v803 = vadd.f32 %v783, %v793
    %v804 = vadd.f32 %v784, %v793
    %v805 = vadd.f32 %v785, %v793
    %v806 = vadd.f32 %v786, %v793
    %v807 = vadd.f32 %v787, %v793
    %v808 = vadd.f32 %v788, %v793
    %v809 = vadd.f32 %v789, %v793
    %v810 = vmax.f32 %v794, 0.0
    %v811 = vmax.f32 %v795, 0.0
    %v812 = vmax.f32 %v796, 0.0
    %v813 = vmax.f32 %v797, 0.0
    %v814 = vmax.f32 %v798, 0.0
    %v815 = vmax.f32 %v799, 0.0
    %v816 = vmax.f32 %v800, 0.0
    %v817 = vmax.f32 %v801, 0.0
    %v818 = vmax.f32 %v802, 0.0
    %v819 = vmax.f32 %v803, 0.0
    %v820 = vmax.f32 %v804, 0.0
    %v821 = vmax.f32 %v805, 0.0
    %v822 = vmax.f32 %v806, 0.0
    %v823 = vmax.f32 %v807, 0.0
    %v824 = vmax.f32 %v808, 0.0
    %v825 = vmax.f32 %v809, 0.0
    %v826 = vadd.f32 %v810, %v473
    %v827 = vadd.f32 %v811, %v474
    %v828 = vadd.f32 %v812, %v475
    %v829 = vadd.f32 %v813, %v476
    %v830 = vadd.f32 %v814, %v477
    %v831 = vadd.f32 %v815, %v478
    %v832 = vadd.f32 %v816, %v479
    %v833 = vadd.f32 %v817, %v480
    %v834 = vadd.f32 %v818, %v481
    %v835 = vadd.f32 %v819, %v482
    %v836 = vadd.f32 %v820, %v483
    %v837 = vadd.f32 %v821, %v484
    %v838 = vadd.f32 %v822, %v485
    %v839 = vadd.f32 %v823, %v486
    %v840 = vadd.f32 %v824, %v487
    %v841 = vadd.f32 %v825, %v488
    %s842 = scalar_lea.vmem [#allocation8], 8
    %v843 = vld [vmem:[%s842] sm:$0x7]
    %v844 = vpack.c.bf16 %v827, %v826
    %v845 = vpack.c.bf16 %v829, %v828
    %v846 = vpack.c.bf16 %v831, %v830
    %v847 = vpack.c.bf16 %v833, %v832
    %v848 = vpack.c.bf16 %v835, %v834
    %v849 = vpack.c.bf16 %v837, %v836
    %v850 = vpack.c.bf16 %v839, %v838
    %v851 = vpack.c.bf16 %v841, %v840
    %s852 = scalar_lea.vmem [#allocation7], 128
    %v853 = vld [vmem:[%s852] sm:$0xf]
    %v854 = vld [vmem:[%s852 + $0x4] sm:$0xf]
    %v855 = vld [vmem:[%s852 + $0x8] sm:$0xf]
    %v856 = vld [vmem:[%s852 + $0xc] sm:$0xf]
    %v857 = vld [vmem:[%s852 + $0x10] sm:$0xf]
    %v858 = vld [vmem:[%s852 + $0x14] sm:$0xf]
    %v859 = vld [vmem:[%s852 + $0x18] sm:$0xf]
    %v860 = vld [vmem:[%s852 + $0x1c] sm:$0xf]
    %v861 = vld [vmem:[%s852 + $0x20] sm:$0xf]
    %v862 = vld [vmem:[%s852 + $0x24] sm:$0xf]
    %v863 = vld [vmem:[%s852 + $0x28] sm:$0xf]
    %v864 = vld [vmem:[%s852 + $0x2c] sm:$0xf]
    %v865 = vld [vmem:[%s852 + $0x30] sm:$0xf]
    %v866 = vld [vmem:[%s852 + $0x34] sm:$0xf]
    %v867 = vld [vmem:[%s852 + $0x38] sm:$0xf]
    %v868 = vld [vmem:[%s852 + $0x3c] sm:$0xf]
    %v869 = vlaneseq
    %v870 = vshrl.u32 %v869, 7
    %v871 = vsub.s32 0, %v870
    %v872 = vrot.slane %v843, %v871
    %v889 = vunpack.c.l.b16 %v853
    %v890 = vunpack.c.l.b16 %v854
    %v891 = vunpack.c.l.b16 %v855
    %v892 = vunpack.c.l.b16 %v856
    %v893 = vunpack.c.l.b16 %v857
    %v894 = vunpack.c.l.b16 %v858
    %v895 = vunpack.c.l.b16 %v859
    %v896 = vunpack.c.l.b16 %v860
    %v897 = vunpack.c.l.b16 %v861
    %v898 = vunpack.c.l.b16 %v862
    %v899 = vunpack.c.l.b16 %v863
    %v900 = vunpack.c.l.b16 %v864
    %v901 = vunpack.c.l.b16 %v865
    %v902 = vunpack.c.l.b16 %v866
    %v903 = vunpack.c.l.b16 %v867
    %v904 = vunpack.c.l.b16 %v868
    %v905 = vpack.c.b16 %v890, %v889
    %v906 = vpack.c.b16 %v892, %v891
    %v907 = vpack.c.b16 %v894, %v893
    %v908 = vpack.c.b16 %v896, %v895
    %v909 = vpack.c.b16 %v898, %v897
    %v910 = vpack.c.b16 %v900, %v899
    %v911 = vpack.c.b16 %v902, %v901
    %v912 = vpack.c.b16 %v904, %v903
    %921 = vmatprep.subr.bf16.mxu0 0
    %922 = vmatpush1.bf16.msra.mxu0 %v912
    %923 = vmatprep.subr.bf16.mxu0 0
    %924 = vmatpush1.bf16.msra.mxu0 %v911
    %925 = vmatprep.subr.bf16.mxu0 0
    %926 = vmatpush1.bf16.msra.mxu0 %v910
    %927 = vmatprep.subr.bf16.mxu0 0
    %928 = vmatpush1.bf16.msra.mxu0 %v909
    %929 = vmatprep.subr.bf16.mxu0 0
    %930 = vmatpush1.bf16.msra.mxu0 %v908
    %931 = vmatprep.subr.bf16.mxu0 0
    %932 = vmatpush1.bf16.msra.mxu0 %v907
    %933 = vmatprep.subr.bf16.mxu0 0
    %934 = vmatpush1.bf16.msra.mxu0 %v906
    %935 = vmatprep.subr.bf16.mxu0 0
    %936 = vmatpush1.bf16.msra.mxu0 %v905
    %937 = vmatprep.subr.bf16.mxu0 0
    %938 = vmatpush2.bf16.msra.mxu0 0
    %939 = vmatprep.subr.bf16.mxu0 0
    %940 = vmatpush2.bf16.msra.mxu0 0
    %941 = vmatprep.subr.bf16.mxu0 0
    %942 = vmatpush2.bf16.msra.mxu0 0
    %943 = vmatprep.subr.bf16.mxu0 0
    %944 = vmatpush2.bf16.msra.mxu0 0
    %945 = vmatprep.subr.bf16.mxu0 0
    %946 = vmatpush2.bf16.msra.mxu0 0
    %947 = vmatprep.subr.bf16.mxu0 0
    %948 = vmatpush2.bf16.msra.mxu0 0
    %949 = vmatprep.subr.bf16.mxu0 0
    %950 = vmatpush2.bf16.msra.mxu0 0
    %951 = vmatprep.subr.bf16.mxu0 0
    %952 = vmatpush2.bf16.msra.mxu0 0
    %953 = vmatprep.mubr.bf16.mxu0 0
    %954 = vmatmul.mubr.bf16.gmra.mxu0 %v844
    %v955 = vpop.f32.mrf.mxu0
    %v956 = vadd.f32 %v872, %v955
    %v957 = vpop.f32.mrf.mxu0
    %v958 = vpop.f32.mrf.mxu0
    %v959 = vadd.f32 %v872, %v958
    %v960 = vpop.f32.mrf.mxu0
    %961 = vmatprep.mubr.bf16.mxu0 0
    %962 = vmatmul.mubr.bf16.gmra.mxu0 %v845
    %v963 = vpop.f32.mrf.mxu0
    %v964 = vadd.f32 %v872, %v963
    %v965 = vpop.f32.mrf.mxu0
    %v966 = vpop.f32.mrf.mxu0
    %v967 = vadd.f32 %v872, %v966
    %v968 = vpop.f32.mrf.mxu0
    %969 = vmatprep.mubr.bf16.mxu0 0
    %970 = vmatmul.mubr.bf16.gmra.mxu0 %v846
    %v971 = vpop.f32.mrf.mxu0
    %v972 = vadd.f32 %v872, %v971
    %v973 = vpop.f32.mrf.mxu0
    %v974 = vpop.f32.mrf.mxu0
    %v975 = vadd.f32 %v872, %v974
    %v976 = vpop.f32.mrf.mxu0
    %977 = vmatprep.mubr.bf16.mxu0 0
    %978 = vmatmul.mubr.bf16.gmra.mxu0 %v847
    %v979 = vpop.f32.mrf.mxu0
    %v980 = vadd.f32 %v872, %v979
    %v981 = vpop.f32.mrf.mxu0
    %v982 = vpop.f32.mrf.mxu0
    %v983 = vadd.f32 %v872, %v982
    %v984 = vpop.f32.mrf.mxu0
    %985 = vmatprep.mubr.bf16.mxu0 0
    %986 = vmatmul.mubr.bf16.gmra.mxu0 %v848
    %v987 = vpop.f32.mrf.mxu0
    %v988 = vadd.f32 %v872, %v987
    %v989 = vpop.f32.mrf.mxu0
    %v990 = vpop.f32.mrf.mxu0
    %v991 = vadd.f32 %v872, %v990
    %v992 = vpop.f32.mrf.mxu0
    %993 = vmatprep.mubr.bf16.mxu0 0
    %994 = vmatmul.mubr.bf16.gmra.mxu0 %v849
    %v995 = vpop.f32.mrf.mxu0
    %v996 = vadd.f32 %v872, %v995
    %v997 = vpop.f32.mrf.mxu0
    %v998 = vpop.f32.mrf.mxu0
    %v999 = vadd.f32 %v872, %v998
    %v1000 = vpop.f32.mrf.mxu0
    %1001 = vmatprep.mubr.bf16.mxu0 0
    %1002 = vmatmul.mubr.bf16.gmra.mxu0 %v850
    %v1003 = vpop.f32.mrf.mxu0
    %v1004 = vadd.f32 %v872, %v1003
    %v1005 = vpop.f32.mrf.mxu0
    %v1006 = vpop.f32.mrf.mxu0
    %v1007 = vadd.f32 %v872, %v1006
    %v1008 = vpop.f32.mrf.mxu0
    %1009 = vmatprep.mubr.bf16.mxu0 0
    %1010 = vmatmul.mubr.bf16.gmra.mxu0 %v851
    %v1011 = vpop.f32.mrf.mxu0
    %v1012 = vadd.f32 %v872, %v1011
    %v1013 = vpop.f32.mrf.mxu0
    %v1014 = vpop.f32.mrf.mxu0
    %v1015 = vadd.f32 %v872, %v1014
    %v1016 = vpop.f32.mrf.mxu0
    %1017 = vdwg.mxu0
    %v1018 = vpack.c.bf16 %v959, %v956
    %v1019 = vpack.c.bf16 %v967, %v964
    %v1020 = vpack.c.bf16 %v975, %v972
    %v1021 = vpack.c.bf16 %v983, %v980
    %v1022 = vpack.c.bf16 %v991, %v988
    %v1023 = vpack.c.bf16 %v999, %v996
    %v1024 = vpack.c.bf16 %v1007, %v1004
    %v1025 = vpack.c.bf16 %v1015, %v1012
    %1026 = vmatprep.subr.bf16.mxu0 0
    %1027 = vmatpush1.bf16.msra.mxu0 %v1025
    %1028 = vmatprep.subr.bf16.mxu0 0
    %1029 = vmatpush1.bf16.msra.mxu0 %v1024
    %1030 = vmatprep.subr.bf16.mxu0 0
    %1031 = vmatpush1.bf16.msra.mxu0 %v1023
    %1032 = vmatprep.subr.bf16.mxu0 0
    %1033 = vmatpush1.bf16.msra.mxu0 %v1022
    %1034 = vmatprep.subr.bf16.mxu0 0
    %1035 = vmatpush1.bf16.msra.mxu0 %v1021
    %1036 = vmatprep.subr.bf16.mxu0 0
    %1037 = vmatpush1.bf16.msra.mxu0 %v1020
    %1038 = vmatprep.subr.bf16.mxu0 0
    %1039 = vmatpush1.bf16.msra.mxu0 %v1019
    %1040 = vmatprep.subr.bf16.mxu0 0
    %1041 = vmatpush1.bf16.msra.mxu0 %v1018
    %1042 = vmatprep.subr.bf16.mxu0 0
    %1043 = vmatpush2.bf16.msra.mxu0 0
    %1044 = vmatprep.subr.bf16.mxu0 0
    %1045 = vmatpush2.bf16.msra.mxu0 0
    %1046 = vmatprep.subr.bf16.mxu0 0
    %1047 = vmatpush2.bf16.msra.mxu0 0
    %1048 = vmatprep.subr.bf16.mxu0 0
    %1049 = vmatpush2.bf16.msra.mxu0 0
    %1050 = vmatprep.subr.bf16.mxu0 0
    %1051 = vmatpush2.bf16.msra.mxu0 0
    %1052 = vmatprep.subr.bf16.mxu0 0
    %1053 = vmatpush2.bf16.msra.mxu0 0
    %1054 = vmatprep.subr.bf16.mxu0 0
    %1055 = vmatpush2.bf16.msra.mxu0 0
    %1056 = vmatprep.subr.bf16.mxu0 0
    %1057 = vmatpush2.bf16.msra.mxu0 0
    %1058 = vmatprep.mubr.bf16.mxu0 0
    %1059 = vmatmul.mubr.bf16.gmra.mxu0 %v320
    %v1060 = vpop.f32.mrf.mxu0
    %v1061 = vadd.f32 0.0, %v1060
    %v1062 = vpop.f32.mrf.mxu0
    %v1063 = vpop.f32.mrf.mxu0
    %v1064 = vadd.f32 0.0, %v1063
    %v1065 = vpop.f32.mrf.mxu0
    %1066 = vmatprep.mubr.bf16.mxu0 0
    %1067 = vmatmul.mubr.bf16.gmra.mxu0 %v321
    %v1068 = vpop.f32.mrf.mxu0
    %v1069 = vadd.f32 0.0, %v1068
    %v1070 = vpop.f32.mrf.mxu0
    %v1071 = vpop.f32.mrf.mxu0
    %v1072 = vadd.f32 0.0, %v1071
    %v1073 = vpop.f32.mrf.mxu0
    %1074 = vmatprep.mubr.bf16.mxu0 0
    %1075 = vmatmul.mubr.bf16.gmra.mxu0 %v322
    %v1076 = vpop.f32.mrf.mxu0
    %v1077 = vadd.f32 0.0, %v1076
    %v1078 = vpop.f32.mrf.mxu0
    %v1079 = vpop.f32.mrf.mxu0
    %v1080 = vadd.f32 0.0, %v1079
    %v1081 = vpop.f32.mrf.mxu0
    %1082 = vmatprep.mubr.bf16.mxu0 0
    %1083 = vmatmul.mubr.bf16.gmra.mxu0 %v323
    %v1084 = vpop.f32.mrf.mxu0
    %v1085 = vadd.f32 0.0, %v1084
    %v1086 = vpop.f32.mrf.mxu0
    %v1087 = vpop.f32.mrf.mxu0
    %v1088 = vadd.f32 0.0, %v1087
    %v1089 = vpop.f32.mrf.mxu0
    %1090 = vmatprep.mubr.bf16.mxu0 0
    %1091 = vmatmul.mubr.bf16.gmra.mxu0 %v324
    %v1092 = vpop.f32.mrf.mxu0
    %v1093 = vadd.f32 0.0, %v1092
    %v1094 = vpop.f32.mrf.mxu0
    %v1095 = vpop.f32.mrf.mxu0
    %v1096 = vadd.f32 0.0, %v1095
    %v1097 = vpop.f32.mrf.mxu0
    %1098 = vmatprep.mubr.bf16.mxu0 0
    %1099 = vmatmul.mubr.bf16.gmra.mxu0 %v325
    %v1100 = vpop.f32.mrf.mxu0
    %v1101 = vadd.f32 0.0, %v1100
    %v1102 = vpop.f32.mrf.mxu0
    %v1103 = vpop.f32.mrf.mxu0
    %v1104 = vadd.f32 0.0, %v1103
    %v1105 = vpop.f32.mrf.mxu0
    %1106 = vmatprep.mubr.bf16.mxu0 0
    %1107 = vmatmul.mubr.bf16.gmra.mxu0 %v326
    %v1108 = vpop.f32.mrf.mxu0
    %v1109 = vadd.f32 0.0, %v1108
    %v1110 = vpop.f32.mrf.mxu0
    %v1111 = vpop.f32.mrf.mxu0
    %v1112 = vadd.f32 0.0, %v1111
    %v1113 = vpop.f32.mrf.mxu0
    %1114 = vmatprep.mubr.bf16.mxu0 0
    %1115 = vmatmul.mubr.bf16.gmra.mxu0 %v327
    %v1116 = vpop.f32.mrf.mxu0
    %v1117 = vadd.f32 0.0, %v1116
    %v1118 = vpop.f32.mrf.mxu0
    %v1119 = vpop.f32.mrf.mxu0
    %v1120 = vadd.f32 0.0, %v1119
    %v1121 = vpop.f32.mrf.mxu0
    %1122 = vdwg.mxu0
    %v1123 = vlaneseq
    %v1124 = vshrl.u32 %v1123, 7
    %v1125 = vsub.s32 1, %v1124
    %v1126 = vrot.slane %v843, %v1125
    %v1127 = vmul.f32 %v1061, %v1126
    %v1128 = vmul.f32 %v1064, %v1126
    %v1129 = vmul.f32 %v1069, %v1126
    %v1130 = vmul.f32 %v1072, %v1126
    %v1131 = vmul.f32 %v1077, %v1126
    %v1132 = vmul.f32 %v1080, %v1126
    %v1133 = vmul.f32 %v1085, %v1126
    %v1134 = vmul.f32 %v1088, %v1126
    %v1135 = vmul.f32 %v1093, %v1126
    %v1136 = vmul.f32 %v1096, %v1126
    %v1137 = vmul.f32 %v1101, %v1126
    %v1138 = vmul.f32 %v1104, %v1126
    %v1139 = vmul.f32 %v1109, %v1126
    %v1140 = vmul.f32 %v1112, %v1126
    %v1141 = vmul.f32 %v1117, %v1126
    %v1142 = vmul.f32 %v1120, %v1126
    %v1143 = vlaneseq
    %v1144 = vshrl.u32 %v1143, 7
    %v1145 = vsub.s32 2, %v1144
    %v1146 = vrot.slane %v843, %v1145
    %v1147 = vadd.f32 %v1127, %v1146
    %v1148 = vadd.f32 %v1128, %v1146
    %v1149 = vadd.f32 %v1129, %v1146
    %v1150 = vadd.f32 %v1130, %v1146
    %v1151 = vadd.f32 %v1131, %v1146
    %v1152 = vadd.f32 %v1132, %v1146
    %v1153 = vadd.f32 %v1133, %v1146
    %v1154 = vadd.f32 %v1134, %v1146
    %v1155 = vadd.f32 %v1135, %v1146
    %v1156 = vadd.f32 %v1136, %v1146
    %v1157 = vadd.f32 %v1137, %v1146
    %v1158 = vadd.f32 %v1138, %v1146
    %v1159 = vadd.f32 %v1139, %v1146
    %v1160 = vadd.f32 %v1140, %v1146
    %v1161 = vadd.f32 %v1141, %v1146
    %v1162 = vadd.f32 %v1142, %v1146
    %v1163 = vmax.f32 %v1147, 0.0
    %v1164 = vmax.f32 %v1148, 0.0
    %v1165 = vmax.f32 %v1149, 0.0
    %v1166 = vmax.f32 %v1150, 0.0
    %v1167 = vmax.f32 %v1151, 0.0
    %v1168 = vmax.f32 %v1152, 0.0
    %v1169 = vmax.f32 %v1153, 0.0
    %v1170 = vmax.f32 %v1154, 0.0
    %v1171 = vmax.f32 %v1155, 0.0
    %v1172 = vmax.f32 %v1156, 0.0
    %v1173 = vmax.f32 %v1157, 0.0
    %v1174 = vmax.f32 %v1158, 0.0
    %v1175 = vmax.f32 %v1159, 0.0
    %v1176 = vmax.f32 %v1160, 0.0
    %v1177 = vmax.f32 %v1161, 0.0
    %v1178 = vmax.f32 %v1162, 0.0
    %v1179 = vadd.f32 %v1163, %v826
    %v1180 = vadd.f32 %v1164, %v827
    %v1181 = vadd.f32 %v1165, %v828
    %v1182 = vadd.f32 %v1166, %v829
    %v1183 = vadd.f32 %v1167, %v830
    %v1184 = vadd.f32 %v1168, %v831
    %v1185 = vadd.f32 %v1169, %v832
    %v1186 = vadd.f32 %v1170, %v833
    %v1187 = vadd.f32 %v1171, %v834
    %v1188 = vadd.f32 %v1172, %v835
    %v1189 = vadd.f32 %v1173, %v836
    %v1190 = vadd.f32 %v1174, %v837
    %v1191 = vadd.f32 %v1175, %v838
    %v1192 = vadd.f32 %v1176, %v839
    %v1193 = vadd.f32 %v1177, %v840
    %v1194 = vadd.f32 %v1178, %v841
    %s1195 = scalar_lea.vmem [#allocation8], 12
    %v1196 = vld [vmem:[%s1195] sm:$0x7]
    %v1197 = vpack.c.bf16 %v1180, %v1179
    %v1198 = vpack.c.bf16 %v1182, %v1181
    %v1199 = vpack.c.bf16 %v1184, %v1183
    %v1200 = vpack.c.bf16 %v1186, %v1185
    %v1201 = vpack.c.bf16 %v1188, %v1187
    %v1202 = vpack.c.bf16 %v1190, %v1189
    %v1203 = vpack.c.bf16 %v1192, %v1191
    %v1204 = vpack.c.bf16 %v1194, %v1193
    %s1205 = scalar_lea.vmem [#allocation7], 192
    %v1206 = vld [vmem:[%s1205] sm:$0xf]
    %v1207 = vld [vmem:[%s1205 + $0x4] sm:$0xf]
    %v1208 = vld [vmem:[%s1205 + $0x8] sm:$0xf]
    %v1209 = vld [vmem:[%s1205 + $0xc] sm:$0xf]
    %v1210 = vld [vmem:[%s1205 + $0x10] sm:$0xf]
    %v1211 = vld [vmem:[%s1205 + $0x14] sm:$0xf]
    %v1212 = vld [vmem:[%s1205 + $0x18] sm:$0xf]
    %v1213 = vld [vmem:[%s1205 + $0x1c] sm:$0xf]
    %v1214 = vld [vmem:[%s1205 + $0x20] sm:$0xf]
    %v1215 = vld [vmem:[%s1205 + $0x24] sm:$0xf]
    %v1216 = vld [vmem:[%s1205 + $0x28] sm:$0xf]
    %v1217 = vld [vmem:[%s1205 + $0x2c] sm:$0xf]
    %v1218 = vld [vmem:[%s1205 + $0x30] sm:$0xf]
    %v1219 = vld [vmem:[%s1205 + $0x34] sm:$0xf]
    %v1220 = vld [vmem:[%s1205 + $0x38] sm:$0xf]
    %v1221 = vld [vmem:[%s1205 + $0x3c] sm:$0xf]
    %v1222 = vlaneseq
    %v1223 = vshrl.u32 %v1222, 7
    %v1224 = vsub.s32 0, %v1223
    %v1225 = vrot.slane %v1196, %v1224
    %v1242 = vunpack.c.l.b16 %v1206
    %v1243 = vunpack.c.l.b16 %v1207
    %v1244 = vunpack.c.l.b16 %v1208
    %v1245 = vunpack.c.l.b16 %v1209
    %v1246 = vunpack.c.l.b16 %v1210
    %v1247 = vunpack.c.l.b16 %v1211
    %v1248 = vunpack.c.l.b16 %v1212
    %v1249 = vunpack.c.l.b16 %v1213
    %v1250 = vunpack.c.l.b16 %v1214
    %v1251 = vunpack.c.l.b16 %v1215
    %v1252 = vunpack.c.l.b16 %v1216
    %v1253 = vunpack.c.l.b16 %v1217
    %v1254 = vunpack.c.l.b16 %v1218
    %v1255 = vunpack.c.l.b16 %v1219
    %v1256 = vunpack.c.l.b16 %v1220
    %v1257 = vunpack.c.l.b16 %v1221
    %v1258 = vpack.c.b16 %v1243, %v1242
    %v1259 = vpack.c.b16 %v1245, %v1244
    %v1260 = vpack.c.b16 %v1247, %v1246
    %v1261 = vpack.c.b16 %v1249, %v1248
    %v1262 = vpack.c.b16 %v1251, %v1250
    %v1263 = vpack.c.b16 %v1253, %v1252
    %v1264 = vpack.c.b16 %v1255, %v1254
    %v1265 = vpack.c.b16 %v1257, %v1256
    %1274 = vmatprep.subr.bf16.mxu0 0
    %1275 = vmatpush1.bf16.msra.mxu0 %v1265
    %1276 = vmatprep.subr.bf16.mxu0 0
    %1277 = vmatpush1.bf16.msra.mxu0 %v1264
    %1278 = vmatprep.subr.bf16.mxu0 0
    %1279 = vmatpush1.bf16.msra.mxu0 %v1263
    %1280 = vmatprep.subr.bf16.mxu0 0
    %1281 = vmatpush1.bf16.msra.mxu0 %v1262
    %1282 = vmatprep.subr.bf16.mxu0 0
    %1283 = vmatpush1.bf16.msra.mxu0 %v1261
    %1284 = vmatprep.subr.bf16.mxu0 0
    %1285 = vmatpush1.bf16.msra.mxu0 %v1260
    %1286 = vmatprep.subr.bf16.mxu0 0
    %1287 = vmatpush1.bf16.msra.mxu0 %v1259
    %1288 = vmatprep.subr.bf16.mxu0 0
    %1289 = vmatpush1.bf16.msra.mxu0 %v1258
    %1290 = vmatprep.subr.bf16.mxu0 0
    %1291 = vmatpush2.bf16.msra.mxu0 0
    %1292 = vmatprep.subr.bf16.mxu0 0
    %1293 = vmatpush2.bf16.msra.mxu0 0
    %1294 = vmatprep.subr.bf16.mxu0 0
    %1295 = vmatpush2.bf16.msra.mxu0 0
    %1296 = vmatprep.subr.bf16.mxu0 0
    %1297 = vmatpush2.bf16.msra.mxu0 0
    %1298 = vmatprep.subr.bf16.mxu0 0
    %1299 = vmatpush2.bf16.msra.mxu0 0
    %1300 = vmatprep.subr.bf16.mxu0 0
    %1301 = vmatpush2.bf16.msra.mxu0 0
    %1302 = vmatprep.subr.bf16.mxu0 0
    %1303 = vmatpush2.bf16.msra.mxu0 0
    %1304 = vmatprep.subr.bf16.mxu0 0
    %1305 = vmatpush2.bf16.msra.mxu0 0
    %1306 = vmatprep.mubr.bf16.mxu0 0
    %1307 = vmatmul.mubr.bf16.gmra.mxu0 %v1197
    %v1308 = vpop.f32.mrf.mxu0
    %v1309 = vadd.f32 %v1225, %v1308
    %v1310 = vpop.f32.mrf.mxu0
    %v1311 = vpop.f32.mrf.mxu0
    %v1312 = vadd.f32 %v1225, %v1311
    %v1313 = vpop.f32.mrf.mxu0
    %1314 = vmatprep.mubr.bf16.mxu0 0
    %1315 = vmatmul.mubr.bf16.gmra.mxu0 %v1198
    %v1316 = vpop.f32.mrf.mxu0
    %v1317 = vadd.f32 %v1225, %v1316
    %v1318 = vpop.f32.mrf.mxu0
    %v1319 = vpop.f32.mrf.mxu0
    %v1320 = vadd.f32 %v1225, %v1319
    %v1321 = vpop.f32.mrf.mxu0
    %1322 = vmatprep.mubr.bf16.mxu0 0
    %1323 = vmatmul.mubr.bf16.gmra.mxu0 %v1199
    %v1324 = vpop.f32.mrf.mxu0
    %v1325 = vadd.f32 %v1225, %v1324
    %v1326 = vpop.f32.mrf.mxu0
    %v1327 = vpop.f32.mrf.mxu0
    %v1328 = vadd.f32 %v1225, %v1327
    %v1329 = vpop.f32.mrf.mxu0
    %1330 = vmatprep.mubr.bf16.mxu0 0
    %1331 = vmatmul.mubr.bf16.gmra.mxu0 %v1200
    %v1332 = vpop.f32.mrf.mxu0
    %v1333 = vadd.f32 %v1225, %v1332
    %v1334 = vpop.f32.mrf.mxu0
    %v1335 = vpop.f32.mrf.mxu0
    %v1336 = vadd.f32 %v1225, %v1335
    %v1337 = vpop.f32.mrf.mxu0
    %1338 = vmatprep.mubr.bf16.mxu0 0
    %1339 = vmatmul.mubr.bf16.gmra.mxu0 %v1201
    %v1340 = vpop.f32.mrf.mxu0
    %v1341 = vadd.f32 %v1225, %v1340
    %v1342 = vpop.f32.mrf.mxu0
    %v1343 = vpop.f32.mrf.mxu0
    %v1344 = vadd.f32 %v1225, %v1343
    %v1345 = vpop.f32.mrf.mxu0
    %1346 = vmatprep.mubr.bf16.mxu0 0
    %1347 = vmatmul.mubr.bf16.gmra.mxu0 %v1202
    %v1348 = vpop.f32.mrf.mxu0
    %v1349 = vadd.f32 %v1225, %v1348
    %v1350 = vpop.f32.mrf.mxu0
    %v1351 = vpop.f32.mrf.mxu0
    %v1352 = vadd.f32 %v1225, %v1351
    %v1353 = vpop.f32.mrf.mxu0
    %1354 = vmatprep.mubr.bf16.mxu0 0
    %1355 = vmatmul.mubr.bf16.gmra.mxu0 %v1203
    %v1356 = vpop.f32.mrf.mxu0
    %v1357 = vadd.f32 %v1225, %v1356
    %v1358 = vpop.f32.mrf.mxu0
    %v1359 = vpop.f32.mrf.mxu0
    %v1360 = vadd.f32 %v1225, %v1359
    %v1361 = vpop.f32.mrf.mxu0
    %1362 = vmatprep.mubr.bf16.mxu0 0
    %1363 = vmatmul.mubr.bf16.gmra.mxu0 %v1204
    %v1364 = vpop.f32.mrf.mxu0
    %v1365 = vadd.f32 %v1225, %v1364
    %v1366 = vpop.f32.mrf.mxu0
    %v1367 = vpop.f32.mrf.mxu0
    %v1368 = vadd.f32 %v1225, %v1367
    %v1369 = vpop.f32.mrf.mxu0
    %1370 = vdwg.mxu0
    %v1371 = vpack.c.bf16 %v1312, %v1309
    %v1372 = vpack.c.bf16 %v1320, %v1317
    %v1373 = vpack.c.bf16 %v1328, %v1325
    %v1374 = vpack.c.bf16 %v1336, %v1333
    %v1375 = vpack.c.bf16 %v1344, %v1341
    %v1376 = vpack.c.bf16 %v1352, %v1349
    %v1377 = vpack.c.bf16 %v1360, %v1357
    %v1378 = vpack.c.bf16 %v1368, %v1365
    %1379 = vmatprep.subr.bf16.mxu0 0
    %1380 = vmatpush1.bf16.msra.mxu0 %v1378
    %1381 = vmatprep.subr.bf16.mxu0 0
    %1382 = vmatpush1.bf16.msra.mxu0 %v1377
    %1383 = vmatprep.subr.bf16.mxu0 0
    %1384 = vmatpush1.bf16.msra.mxu0 %v1376
    %1385 = vmatprep.subr.bf16.mxu0 0
    %1386 = vmatpush1.bf16.msra.mxu0 %v1375
    %1387 = vmatprep.subr.bf16.mxu0 0
    %1388 = vmatpush1.bf16.msra.mxu0 %v1374
    %1389 = vmatprep.subr.bf16.mxu0 0
    %1390 = vmatpush1.bf16.msra.mxu0 %v1373
    %1391 = vmatprep.subr.bf16.mxu0 0
    %1392 = vmatpush1.bf16.msra.mxu0 %v1372
    %1393 = vmatprep.subr.bf16.mxu0 0
    %1394 = vmatpush1.bf16.msra.mxu0 %v1371
    %1395 = vmatprep.subr.bf16.mxu0 0
    %1396 = vmatpush2.bf16.msra.mxu0 0
    %1397 = vmatprep.subr.bf16.mxu0 0
    %1398 = vmatpush2.bf16.msra.mxu0 0
    %1399 = vmatprep.subr.bf16.mxu0 0
    %1400 = vmatpush2.bf16.msra.mxu0 0
    %1401 = vmatprep.subr.bf16.mxu0 0
    %1402 = vmatpush2.bf16.msra.mxu0 0
    %1403 = vmatprep.subr.bf16.mxu0 0
    %1404 = vmatpush2.bf16.msra.mxu0 0
    %1405 = vmatprep.subr.bf16.mxu0 0
    %1406 = vmatpush2.bf16.msra.mxu0 0
    %1407 = vmatprep.subr.bf16.mxu0 0
    %1408 = vmatpush2.bf16.msra.mxu0 0
    %1409 = vmatprep.subr.bf16.mxu0 0
    %1410 = vmatpush2.bf16.msra.mxu0 0
    %1411 = vmatprep.mubr.bf16.mxu0 0
    %1412 = vmatmul.mubr.bf16.gmra.mxu0 %v320
    %v1413 = vpop.f32.mrf.mxu0
    %v1414 = vadd.f32 0.0, %v1413
    %v1415 = vpop.f32.mrf.mxu0
    %v1416 = vpop.f32.mrf.mxu0
    %v1417 = vadd.f32 0.0, %v1416
    %v1418 = vpop.f32.mrf.mxu0
    %1419 = vmatprep.mubr.bf16.mxu0 0
    %1420 = vmatmul.mubr.bf16.gmra.mxu0 %v321
    %v1421 = vpop.f32.mrf.mxu0
    %v1422 = vadd.f32 0.0, %v1421
    %v1423 = vpop.f32.mrf.mxu0
    %v1424 = vpop.f32.mrf.mxu0
    %v1425 = vadd.f32 0.0, %v1424
    %v1426 = vpop.f32.mrf.mxu0
    %1427 = vmatprep.mubr.bf16.mxu0 0
    %1428 = vmatmul.mubr.bf16.gmra.mxu0 %v322
    %v1429 = vpop.f32.mrf.mxu0
    %v1430 = vadd.f32 0.0, %v1429
    %v1431 = vpop.f32.mrf.mxu0
    %v1432 = vpop.f32.mrf.mxu0
    %v1433 = vadd.f32 0.0, %v1432
    %v1434 = vpop.f32.mrf.mxu0
    %1435 = vmatprep.mubr.bf16.mxu0 0
    %1436 = vmatmul.mubr.bf16.gmra.mxu0 %v323
    %v1437 = vpop.f32.mrf.mxu0
    %v1438 = vadd.f32 0.0, %v1437
    %v1439 = vpop.f32.mrf.mxu0
    %v1440 = vpop.f32.mrf.mxu0
    %v1441 = vadd.f32 0.0, %v1440
    %v1442 = vpop.f32.mrf.mxu0
    %1443 = vmatprep.mubr.bf16.mxu0 0
    %1444 = vmatmul.mubr.bf16.gmra.mxu0 %v324
    %v1445 = vpop.f32.mrf.mxu0
    %v1446 = vadd.f32 0.0, %v1445
    %v1447 = vpop.f32.mrf.mxu0
    %v1448 = vpop.f32.mrf.mxu0
    %v1449 = vadd.f32 0.0, %v1448
    %v1450 = vpop.f32.mrf.mxu0
    %1451 = vmatprep.mubr.bf16.mxu0 0
    %1452 = vmatmul.mubr.bf16.gmra.mxu0 %v325
    %v1453 = vpop.f32.mrf.mxu0
    %v1454 = vadd.f32 0.0, %v1453
    %v1455 = vpop.f32.mrf.mxu0
    %v1456 = vpop.f32.mrf.mxu0
    %v1457 = vadd.f32 0.0, %v1456
    %v1458 = vpop.f32.mrf.mxu0
    %1459 = vmatprep.mubr.bf16.mxu0 0
    %1460 = vmatmul.mubr.bf16.gmra.mxu0 %v326
    %v1461 = vpop.f32.mrf.mxu0
    %v1462 = vadd.f32 0.0, %v1461
    %v1463 = vpop.f32.mrf.mxu0
    %v1464 = vpop.f32.mrf.mxu0
    %v1465 = vadd.f32 0.0, %v1464
    %v1466 = vpop.f32.mrf.mxu0
    %1467 = vmatprep.mubr.bf16.mxu0 0
    %1468 = vmatmul.mubr.bf16.gmra.mxu0 %v327
    %v1469 = vpop.f32.mrf.mxu0
    %v1470 = vadd.f32 0.0, %v1469
    %v1471 = vpop.f32.mrf.mxu0
    %v1472 = vpop.f32.mrf.mxu0
    %v1473 = vadd.f32 0.0, %v1472
    %v1474 = vpop.f32.mrf.mxu0
    %1475 = vdwg.mxu0
    %v1476 = vlaneseq
    %v1477 = vshrl.u32 %v1476, 7
    %v1478 = vsub.s32 1, %v1477
    %v1479 = vrot.slane %v1196, %v1478
    %v1480 = vmul.f32 %v1414, %v1479
    %v1481 = vmul.f32 %v1417, %v1479
    %v1482 = vmul.f32 %v1422, %v1479
    %v1483 = vmul.f32 %v1425, %v1479
    %v1484 = vmul.f32 %v1430, %v1479
    %v1485 = vmul.f32 %v1433, %v1479
    %v1486 = vmul.f32 %v1438, %v1479
    %v1487 = vmul.f32 %v1441, %v1479
    %v1488 = vmul.f32 %v1446, %v1479
    %v1489 = vmul.f32 %v1449, %v1479
    %v1490 = vmul.f32 %v1454, %v1479
    %v1491 = vmul.f32 %v1457, %v1479
    %v1492 = vmul.f32 %v1462, %v1479
    %v1493 = vmul.f32 %v1465, %v1479
    %v1494 = vmul.f32 %v1470, %v1479
    %v1495 = vmul.f32 %v1473, %v1479
    %v1496 = vlaneseq
    %v1497 = vshrl.u32 %v1496, 7
    %v1498 = vsub.s32 2, %v1497
    %v1499 = vrot.slane %v1196, %v1498
    %v1500 = vadd.f32 %v1480, %v1499
    %v1501 = vadd.f32 %v1481, %v1499
    %v1502 = vadd.f32 %v1482, %v1499
    %v1503 = vadd.f32 %v1483, %v1499
    %v1504 = vadd.f32 %v1484, %v1499
    %v1505 = vadd.f32 %v1485, %v1499
    %v1506 = vadd.f32 %v1486, %v1499
    %v1507 = vadd.f32 %v1487, %v1499
    %v1508 = vadd.f32 %v1488, %v1499
    %v1509 = vadd.f32 %v1489, %v1499
    %v1510 = vadd.f32 %v1490, %v1499
    %v1511 = vadd.f32 %v1491, %v1499
    %v1512 = vadd.f32 %v1492, %v1499
    %v1513 = vadd.f32 %v1493, %v1499
    %v1514 = vadd.f32 %v1494, %v1499
    %v1515 = vadd.f32 %v1495, %v1499
    %v1516 = vmax.f32 %v1500, 0.0
    %v1517 = vmax.f32 %v1501, 0.0
    %v1518 = vmax.f32 %v1502, 0.0
    %v1519 = vmax.f32 %v1503, 0.0
    %v1520 = vmax.f32 %v1504, 0.0
    %v1521 = vmax.f32 %v1505, 0.0
    %v1522 = vmax.f32 %v1506, 0.0
    %v1523 = vmax.f32 %v1507, 0.0
    %v1524 = vmax.f32 %v1508, 0.0
    %v1525 = vmax.f32 %v1509, 0.0
    %v1526 = vmax.f32 %v1510, 0.0
    %v1527 = vmax.f32 %v1511, 0.0
    %v1528 = vmax.f32 %v1512, 0.0
    %v1529 = vmax.f32 %v1513, 0.0
    %v1530 = vmax.f32 %v1514, 0.0
    %v1531 = vmax.f32 %v1515, 0.0
    %v1532 = vadd.f32 %v1516, %v1179
    %v1533 = vadd.f32 %v1517, %v1180
    %v1534 = vadd.f32 %v1518, %v1181
    %v1535 = vadd.f32 %v1519, %v1182
    %v1536 = vadd.f32 %v1520, %v1183
    %v1537 = vadd.f32 %v1521, %v1184
    %v1538 = vadd.f32 %v1522, %v1185
    %v1539 = vadd.f32 %v1523, %v1186
    %v1540 = vadd.f32 %v1524, %v1187
    %v1541 = vadd.f32 %v1525, %v1188
    %v1542 = vadd.f32 %v1526, %v1189
    %v1543 = vadd.f32 %v1527, %v1190
    %v1544 = vadd.f32 %v1528, %v1191
    %v1545 = vadd.f32 %v1529, %v1192
    %v1546 = vadd.f32 %v1530, %v1193
    %v1547 = vadd.f32 %v1531, %v1194
    %s1548 = scalar_lea.vmem [#allocation8], 16
    %v1549 = vld [vmem:[%s1548] sm:$0x7]
    %v1550 = vpack.c.bf16 %v1533, %v1532
    %v1551 = vpack.c.bf16 %v1535, %v1534
    %v1552 = vpack.c.bf16 %v1537, %v1536
    %v1553 = vpack.c.bf16 %v1539, %v1538
    %v1554 = vpack.c.bf16 %v1541, %v1540
    %v1555 = vpack.c.bf16 %v1543, %v1542
    %v1556 = vpack.c.bf16 %v1545, %v1544
    %v1557 = vpack.c.bf16 %v1547, %v1546
    %s1558 = scalar_lea.vmem [#allocation7], 256
    %v1559 = vld [vmem:[%s1558] sm:$0xf]
    %v1560 = vld [vmem:[%s1558 + $0x4] sm:$0xf]
    %v1561 = vld [vmem:[%s1558 + $0x8] sm:$0xf]
    %v1562 = vld [vmem:[%s1558 + $0xc] sm:$0xf]
    %v1563 = vld [vmem:[%s1558 + $0x10] sm:$0xf]
    %v1564 = vld [vmem:[%s1558 + $0x14] sm:$0xf]
    %v1565 = vld [vmem:[%s1558 + $0x18] sm:$0xf]
    %v1566 = vld [vmem:[%s1558 + $0x1c] sm:$0xf]
    %v1567 = vld [vmem:[%s1558 + $0x20] sm:$0xf]
    %v1568 = vld [vmem:[%s1558 + $0x24] sm:$0xf]
    %v1569 = vld [vmem:[%s1558 + $0x28] sm:$0xf]
    %v1570 = vld [vmem:[%s1558 + $0x2c] sm:$0xf]
    %v1571 = vld [vmem:[%s1558 + $0x30] sm:$0xf]
    %v1572 = vld [vmem:[%s1558 + $0x34] sm:$0xf]
    %v1573 = vld [vmem:[%s1558 + $0x38] sm:$0xf]
    %v1574 = vld [vmem:[%s1558 + $0x3c] sm:$0xf]
    %v1575 = vlaneseq
    %v1576 = vshrl.u32 %v1575, 7
    %v1577 = vsub.s32 0, %v1576
    %v1578 = vrot.slane %v1549, %v1577
    %v1595 = vunpack.c.l.b16 %v1559
    %v1596 = vunpack.c.l.b16 %v1560
    %v1597 = vunpack.c.l.b16 %v1561
    %v1598 = vunpack.c.l.b16 %v1562
    %v1599 = vunpack.c.l.b16 %v1563
    %v1600 = vunpack.c.l.b16 %v1564
    %v1601 = vunpack.c.l.b16 %v1565
    %v1602 = vunpack.c.l.b16 %v1566
    %v1603 = vunpack.c.l.b16 %v1567
    %v1604 = vunpack.c.l.b16 %v1568
    %v1605 = vunpack.c.l.b16 %v1569
    %v1606 = vunpack.c.l.b16 %v1570
    %v1607 = vunpack.c.l.b16 %v1571
    %v1608 = vunpack.c.l.b16 %v1572
    %v1609 = vunpack.c.l.b16 %v1573
    %v1610 = vunpack.c.l.b16 %v1574
    %v1611 = vpack.c.b16 %v1596, %v1595
    %v1612 = vpack.c.b16 %v1598, %v1597
    %v1613 = vpack.c.b16 %v1600, %v1599
    %v1614 = vpack.c.b16 %v1602, %v1601
    %v1615 = vpack.c.b16 %v1604, %v1603
    %v1616 = vpack.c.b16 %v1606, %v1605
    %v1617 = vpack.c.b16 %v1608, %v1607
    %v1618 = vpack.c.b16 %v1610, %v1609
    %1627 = vmatprep.subr.bf16.mxu0 0
    %1628 = vmatpush1.bf16.msra.mxu0 %v1618
    %1629 = vmatprep.subr.bf16.mxu0 0
    %1630 = vmatpush1.bf16.msra.mxu0 %v1617
    %1631 = vmatprep.subr.bf16.mxu0 0
    %1632 = vmatpush1.bf16.msra.mxu0 %v1616
    %1633 = vmatprep.subr.bf16.mxu0 0
    %1634 = vmatpush1.bf16.msra.mxu0 %v1615
    %1635 = vmatprep.subr.bf16.mxu0 0
    %1636 = vmatpush1.bf16.msra.mxu0 %v1614
    %1637 = vmatprep.subr.bf16.mxu0 0
    %1638 = vmatpush1.bf16.msra.mxu0 %v1613
    %1639 = vmatprep.subr.bf16.mxu0 0
    %1640 = vmatpush1.bf16.msra.mxu0 %v1612
    %1641 = vmatprep.subr.bf16.mxu0 0
    %1642 = vmatpush1.bf16.msra.mxu0 %v1611
    %1643 = vmatprep.subr.bf16.mxu0 0
    %1644 = vmatpush2.bf16.msra.mxu0 0
    %1645 = vmatprep.subr.bf16.mxu0 0
    %1646 = vmatpush2.bf16.msra.mxu0 0
    %1647 = vmatprep.subr.bf16.mxu0 0
    %1648 = vmatpush2.bf16.msra.mxu0 0
    %1649 = vmatprep.subr.bf16.mxu0 0
    %1650 = vmatpush2.bf16.msra.mxu0 0
    %1651 = vmatprep.subr.bf16.mxu0 0
    %1652 = vmatpush2.bf16.msra.mxu0 0
    %1653 = vmatprep.subr.bf16.mxu0 0
    %1654 = vmatpush2.bf16.msra.mxu0 0
    %1655 = vmatprep.subr.bf16.mxu0 0
    %1656 = vmatpush2.bf16.msra.mxu0 0
    %1657 = vmatprep.subr.bf16.mxu0 0
    %1658 = vmatpush2.bf16.msra.mxu0 0
    %1659 = vmatprep.mubr.bf16.mxu0 0
    %1660 = vmatmul.mubr.bf16.gmra.mxu0 %v1550
    %v1661 = vpop.f32.mrf.mxu0
    %v1662 = vadd.f32 %v1578, %v1661
    %v1663 = vpop.f32.mrf.mxu0
    %v1664 = vpop.f32.mrf.mxu0
    %v1665 = vadd.f32 %v1578, %v1664
    %v1666 = vpop.f32.mrf.mxu0
    %1667 = vmatprep.mubr.bf16.mxu0 0
    %1668 = vmatmul.mubr.bf16.gmra.mxu0 %v1551
    %v1669 = vpop.f32.mrf.mxu0
    %v1670 = vadd.f32 %v1578, %v1669
    %v1671 = vpop.f32.mrf.mxu0
    %v1672 = vpop.f32.mrf.mxu0
    %v1673 = vadd.f32 %v1578, %v1672
    %v1674 = vpop.f32.mrf.mxu0
    %1675 = vmatprep.mubr.bf16.mxu0 0
    %1676 = vmatmul.mubr.bf16.gmra.mxu0 %v1552
    %v1677 = vpop.f32.mrf.mxu0
    %v1678 = vadd.f32 %v1578, %v1677
    %v1679 = vpop.f32.mrf.mxu0
    %v1680 = vpop.f32.mrf.mxu0
    %v1681 = vadd.f32 %v1578, %v1680
    %v1682 = vpop.f32.mrf.mxu0
    %1683 = vmatprep.mubr.bf16.mxu0 0
    %1684 = vmatmul.mubr.bf16.gmra.mxu0 %v1553
    %v1685 = vpop.f32.mrf.mxu0
    %v1686 = vadd.f32 %v1578, %v1685
    %v1687 = vpop.f32.mrf.mxu0
    %v1688 = vpop.f32.mrf.mxu0
    %v1689 = vadd.f32 %v1578, %v1688
    %v1690 = vpop.f32.mrf.mxu0
    %1691 = vmatprep.mubr.bf16.mxu0 0
    %1692 = vmatmul.mubr.bf16.gmra.mxu0 %v1554
    %v1693 = vpop.f32.mrf.mxu0
    %v1694 = vadd.f32 %v1578, %v1693
    %v1695 = vpop.f32.mrf.mxu0
    %v1696 = vpop.f32.mrf.mxu0
    %v1697 = vadd.f32 %v1578, %v1696
    %v1698 = vpop.f32.mrf.mxu0
    %1699 = vmatprep.mubr.bf16.mxu0 0
    %1700 = vmatmul.mubr.bf16.gmra.mxu0 %v1555
    %v1701 = vpop.f32.mrf.mxu0
    %v1702 = vadd.f32 %v1578, %v1701
    %v1703 = vpop.f32.mrf.mxu0
    %v1704 = vpop.f32.mrf.mxu0
    %v1705 = vadd.f32 %v1578, %v1704
    %v1706 = vpop.f32.mrf.mxu0
    %1707 = vmatprep.mubr.bf16.mxu0 0
    %1708 = vmatmul.mubr.bf16.gmra.mxu0 %v1556
    %v1709 = vpop.f32.mrf.mxu0
    %v1710 = vadd.f32 %v1578, %v1709
    %v1711 = vpop.f32.mrf.mxu0
    %v1712 = vpop.f32.mrf.mxu0
    %v1713 = vadd.f32 %v1578, %v1712
    %v1714 = vpop.f32.mrf.mxu0
    %1715 = vmatprep.mubr.bf16.mxu0 0
    %1716 = vmatmul.mubr.bf16.gmra.mxu0 %v1557
    %v1717 = vpop.f32.mrf.mxu0
    %v1718 = vadd.f32 %v1578, %v1717
    %v1719 = vpop.f32.mrf.mxu0
    %v1720 = vpop.f32.mrf.mxu0
    %v1721 = vadd.f32 %v1578, %v1720
    %v1722 = vpop.f32.mrf.mxu0
    %1723 = vdwg.mxu0
    %v1724 = vpack.c.bf16 %v1665, %v1662
    %v1725 = vpack.c.bf16 %v1673, %v1670
    %v1726 = vpack.c.bf16 %v1681, %v1678
    %v1727 = vpack.c.bf16 %v1689, %v1686
    %v1728 = vpack.c.bf16 %v1697, %v1694
    %v1729 = vpack.c.bf16 %v1705, %v1702
    %v1730 = vpack.c.bf16 %v1713, %v1710
    %v1731 = vpack.c.bf16 %v1721, %v1718
    %1732 = vmatprep.subr.bf16.mxu0 0
    %1733 = vmatpush1.bf16.msra.mxu0 %v1731
    %1734 = vmatprep.subr.bf16.mxu0 0
    %1735 = vmatpush1.bf16.msra.mxu0 %v1730
    %1736 = vmatprep.subr.bf16.mxu0 0
    %1737 = vmatpush1.bf16.msra.mxu0 %v1729
    %1738 = vmatprep.subr.bf16.mxu0 0
    %1739 = vmatpush1.bf16.msra.mxu0 %v1728
    %1740 = vmatprep.subr.bf16.mxu0 0
    %1741 = vmatpush1.bf16.msra.mxu0 %v1727
    %1742 = vmatprep.subr.bf16.mxu0 0
    %1743 = vmatpush1.bf16.msra.mxu0 %v1726
    %1744 = vmatprep.subr.bf16.mxu0 0
    %1745 = vmatpush1.bf16.msra.mxu0 %v1725
    %1746 = vmatprep.subr.bf16.mxu0 0
    %1747 = vmatpush1.bf16.msra.mxu0 %v1724
    %1748 = vmatprep.subr.bf16.mxu0 0
    %1749 = vmatpush2.bf16.msra.mxu0 0
    %1750 = vmatprep.subr.bf16.mxu0 0
    %1751 = vmatpush2.bf16.msra.mxu0 0
    %1752 = vmatprep.subr.bf16.mxu0 0
    %1753 = vmatpush2.bf16.msra.mxu0 0
    %1754 = vmatprep.subr.bf16.mxu0 0
    %1755 = vmatpush2.bf16.msra.mxu0 0
    %1756 = vmatprep.subr.bf16.mxu0 0
    %1757 = vmatpush2.bf16.msra.mxu0 0
    %1758 = vmatprep.subr.bf16.mxu0 0
    %1759 = vmatpush2.bf16.msra.mxu0 0
    %1760 = vmatprep.subr.bf16.mxu0 0
    %1761 = vmatpush2.bf16.msra.mxu0 0
    %1762 = vmatprep.subr.bf16.mxu0 0
    %1763 = vmatpush2.bf16.msra.mxu0 0
    %1764 = vmatprep.mubr.bf16.mxu0 0
    %1765 = vmatmul.mubr.bf16.gmra.mxu0 %v320
    %v1766 = vpop.f32.mrf.mxu0
    %v1767 = vadd.f32 0.0, %v1766
    %v1768 = vpop.f32.mrf.mxu0
    %v1769 = vpop.f32.mrf.mxu0
    %v1770 = vadd.f32 0.0, %v1769
    %v1771 = vpop.f32.mrf.mxu0
    %1772 = vmatprep.mubr.bf16.mxu0 0
    %1773 = vmatmul.mubr.bf16.gmra.mxu0 %v321
    %v1774 = vpop.f32.mrf.mxu0
    %v1775 = vadd.f32 0.0, %v1774
    %v1776 = vpop.f32.mrf.mxu0
    %v1777 = vpop.f32.mrf.mxu0
    %v1778 = vadd.f32 0.0, %v1777
    %v1779 = vpop.f32.mrf.mxu0
    %1780 = vmatprep.mubr.bf16.mxu0 0
    %1781 = vmatmul.mubr.bf16.gmra.mxu0 %v322
    %v1782 = vpop.f32.mrf.mxu0
    %v1783 = vadd.f32 0.0, %v1782
    %v1784 = vpop.f32.mrf.mxu0
    %v1785 = vpop.f32.mrf.mxu0
    %v1786 = vadd.f32 0.0, %v1785
    %v1787 = vpop.f32.mrf.mxu0
    %1788 = vmatprep.mubr.bf16.mxu0 0
    %1789 = vmatmul.mubr.bf16.gmra.mxu0 %v323
    %v1790 = vpop.f32.mrf.mxu0
    %v1791 = vadd.f32 0.0, %v1790
    %v1792 = vpop.f32.mrf.mxu0
    %v1793 = vpop.f32.mrf.mxu0
    %v1794 = vadd.f32 0.0, %v1793
    %v1795 = vpop.f32.mrf.mxu0
    %1796 = vmatprep.mubr.bf16.mxu0 0
    %1797 = vmatmul.mubr.bf16.gmra.mxu0 %v324
    %v1798 = vpop.f32.mrf.mxu0
    %v1799 = vadd.f32 0.0, %v1798
    %v1800 = vpop.f32.mrf.mxu0
    %v1801 = vpop.f32.mrf.mxu0
    %v1802 = vadd.f32 0.0, %v1801
    %v1803 = vpop.f32.mrf.mxu0
    %1804 = vmatprep.mubr.bf16.mxu0 0
    %1805 = vmatmul.mubr.bf16.gmra.mxu0 %v325
    %v1806 = vpop.f32.mrf.mxu0
    %v1807 = vadd.f32 0.0, %v1806
    %v1808 = vpop.f32.mrf.mxu0
    %v1809 = vpop.f32.mrf.mxu0
    %v1810 = vadd.f32 0.0, %v1809
    %v1811 = vpop.f32.mrf.mxu0
    %1812 = vmatprep.mubr.bf16.mxu0 0
    %1813 = vmatmul.mubr.bf16.gmra.mxu0 %v326
    %v1814 = vpop.f32.mrf.mxu0
    %v1815 = vadd.f32 0.0, %v1814
    %v1816 = vpop.f32.mrf.mxu0
    %v1817 = vpop.f32.mrf.mxu0
    %v1818 = vadd.f32 0.0, %v1817
    %v1819 = vpop.f32.mrf.mxu0
    %1820 = vmatprep.mubr.bf16.mxu0 0
    %1821 = vmatmul.mubr.bf16.gmra.mxu0 %v327
    %v1822 = vpop.f32.mrf.mxu0
    %v1823 = vadd.f32 0.0, %v1822
    %v1824 = vpop.f32.mrf.mxu0
    %v1825 = vpop.f32.mrf.mxu0
    %v1826 = vadd.f32 0.0, %v1825
    %v1827 = vpop.f32.mrf.mxu0
    %1828 = vdwg.mxu0
    %v1829 = vlaneseq
    %v1830 = vshrl.u32 %v1829, 7
    %v1831 = vsub.s32 1, %v1830
    %v1832 = vrot.slane %v1549, %v1831
    %v1833 = vmul.f32 %v1767, %v1832
    %v1834 = vmul.f32 %v1770, %v1832
    %v1835 = vmul.f32 %v1775, %v1832
    %v1836 = vmul.f32 %v1778, %v1832
    %v1837 = vmul.f32 %v1783, %v1832
    %v1838 = vmul.f32 %v1786, %v1832
    %v1839 = vmul.f32 %v1791, %v1832
    %v1840 = vmul.f32 %v1794, %v1832
    %v1841 = vmul.f32 %v1799, %v1832
    %v1842 = vmul.f32 %v1802, %v1832
    %v1843 = vmul.f32 %v1807, %v1832
    %v1844 = vmul.f32 %v1810, %v1832
    %v1845 = vmul.f32 %v1815, %v1832
    %v1846 = vmul.f32 %v1818, %v1832
    %v1847 = vmul.f32 %v1823, %v1832
    %v1848 = vmul.f32 %v1826, %v1832
    %v1849 = vlaneseq
    %v1850 = vshrl.u32 %v1849, 7
    %v1851 = vsub.s32 2, %v1850
    %v1852 = vrot.slane %v1549, %v1851
    %v1853 = vadd.f32 %v1833, %v1852
    %v1854 = vadd.f32 %v1834, %v1852
    %v1855 = vadd.f32 %v1835, %v1852
    %v1856 = vadd.f32 %v1836, %v1852
    %v1857 = vadd.f32 %v1837, %v1852
    %v1858 = vadd.f32 %v1838, %v1852
    %v1859 = vadd.f32 %v1839, %v1852
    %v1860 = vadd.f32 %v1840, %v1852
    %v1861 = vadd.f32 %v1841, %v1852
    %v1862 = vadd.f32 %v1842, %v1852
    %v1863 = vadd.f32 %v1843, %v1852
    %v1864 = vadd.f32 %v1844, %v1852
    %v1865 = vadd.f32 %v1845, %v1852
    %v1866 = vadd.f32 %v1846, %v1852
    %v1867 = vadd.f32 %v1847, %v1852
    %v1868 = vadd.f32 %v1848, %v1852
    %v1869 = vmax.f32 %v1853, 0.0
    %v1870 = vmax.f32 %v1854, 0.0
    %v1871 = vmax.f32 %v1855, 0.0
    %v1872 = vmax.f32 %v1856, 0.0
    %v1873 = vmax.f32 %v1857, 0.0
    %v1874 = vmax.f32 %v1858, 0.0
    %v1875 = vmax.f32 %v1859, 0.0
    %v1876 = vmax.f32 %v1860, 0.0
    %v1877 = vmax.f32 %v1861, 0.0
    %v1878 = vmax.f32 %v1862, 0.0
    %v1879 = vmax.f32 %v1863, 0.0
    %v1880 = vmax.f32 %v1864, 0.0
    %v1881 = vmax.f32 %v1865, 0.0
    %v1882 = vmax.f32 %v1866, 0.0
    %v1883 = vmax.f32 %v1867, 0.0
    %v1884 = vmax.f32 %v1868, 0.0
    %v1885 = vadd.f32 %v1869, %v1532
    %v1886 = vadd.f32 %v1870, %v1533
    %v1887 = vadd.f32 %v1871, %v1534
    %v1888 = vadd.f32 %v1872, %v1535
    %v1889 = vadd.f32 %v1873, %v1536
    %v1890 = vadd.f32 %v1874, %v1537
    %v1891 = vadd.f32 %v1875, %v1538
    %v1892 = vadd.f32 %v1876, %v1539
    %v1893 = vadd.f32 %v1877, %v1540
    %v1894 = vadd.f32 %v1878, %v1541
    %v1895 = vadd.f32 %v1879, %v1542
    %v1896 = vadd.f32 %v1880, %v1543
    %v1897 = vadd.f32 %v1881, %v1544
    %v1898 = vadd.f32 %v1882, %v1545
    %v1899 = vadd.f32 %v1883, %v1546
    %v1900 = vadd.f32 %v1884, %v1547
    %s1901 = scalar_lea.vmem [#allocation8], 20
    %v1902 = vld [vmem:[%s1901] sm:$0x7]
    %v1903 = vpack.c.bf16 %v1886, %v1885
    %v1904 = vpack.c.bf16 %v1888, %v1887
    %v1905 = vpack.c.bf16 %v1890, %v1889
    %v1906 = vpack.c.bf16 %v1892, %v1891
    %v1907 = vpack.c.bf16 %v1894, %v1893
    %v1908 = vpack.c.bf16 %v1896, %v1895
    %v1909 = vpack.c.bf16 %v1898, %v1897
    %v1910 = vpack.c.bf16 %v1900, %v1899
    %s1911 = scalar_lea.vmem [#allocation7], 320
    %v1912 = vld [vmem:[%s1911] sm:$0xf]
    %v1913 = vld [vmem:[%s1911 + $0x4] sm:$0xf]
    %v1914 = vld [vmem:[%s1911 + $0x8] sm:$0xf]
    %v1915 = vld [vmem:[%s1911 + $0xc] sm:$0xf]
    %v1916 = vld [vmem:[%s1911 + $0x10] sm:$0xf]
    %v1917 = vld [vmem:[%s1911 + $0x14] sm:$0xf]
    %v1918 = vld [vmem:[%s1911 + $0x18] sm:$0xf]
    %v1919 = vld [vmem:[%s1911 + $0x1c] sm:$0xf]
    %v1920 = vld [vmem:[%s1911 + $0x20] sm:$0xf]
    %v1921 = vld [vmem:[%s1911 + $0x24] sm:$0xf]
    %v1922 = vld [vmem:[%s1911 + $0x28] sm:$0xf]
    %v1923 = vld [vmem:[%s1911 + $0x2c] sm:$0xf]
    %v1924 = vld [vmem:[%s1911 + $0x30] sm:$0xf]
    %v1925 = vld [vmem:[%s1911 + $0x34] sm:$0xf]
    %v1926 = vld [vmem:[%s1911 + $0x38] sm:$0xf]
    %v1927 = vld [vmem:[%s1911 + $0x3c] sm:$0xf]
    %v1928 = vlaneseq
    %v1929 = vshrl.u32 %v1928, 7
    %v1930 = vsub.s32 0, %v1929
    %v1931 = vrot.slane %v1902, %v1930
    %v1948 = vunpack.c.l.b16 %v1912
    %v1949 = vunpack.c.l.b16 %v1913
    %v1950 = vunpack.c.l.b16 %v1914
    %v1951 = vunpack.c.l.b16 %v1915
    %v1952 = vunpack.c.l.b16 %v1916
    %v1953 = vunpack.c.l.b16 %v1917
    %v1954 = vunpack.c.l.b16 %v1918
    %v1955 = vunpack.c.l.b16 %v1919
    %v1956 = vunpack.c.l.b16 %v1920
    %v1957 = vunpack.c.l.b16 %v1921
    %v1958 = vunpack.c.l.b16 %v1922
    %v1959 = vunpack.c.l.b16 %v1923
    %v1960 = vunpack.c.l.b16 %v1924
    %v1961 = vunpack.c.l.b16 %v1925
    %v1962 = vunpack.c.l.b16 %v1926
    %v1963 = vunpack.c.l.b16 %v1927
    %v1964 = vpack.c.b16 %v1949, %v1948
    %v1965 = vpack.c.b16 %v1951, %v1950
    %v1966 = vpack.c.b16 %v1953, %v1952
    %v1967 = vpack.c.b16 %v1955, %v1954
    %v1968 = vpack.c.b16 %v1957, %v1956
    %v1969 = vpack.c.b16 %v1959, %v1958
    %v1970 = vpack.c.b16 %v1961, %v1960
    %v1971 = vpack.c.b16 %v1963, %v1962
    %1980 = vmatprep.subr.bf16.mxu0 0
    %1981 = vmatpush1.bf16.msra.mxu0 %v1971
    %1982 = vmatprep.subr.bf16.mxu0 0
    %1983 = vmatpush1.bf16.msra.mxu0 %v1970
    %1984 = vmatprep.subr.bf16.mxu0 0
    %1985 = vmatpush1.bf16.msra.mxu0 %v1969
    %1986 = vmatprep.subr.bf16.mxu0 0
    %1987 = vmatpush1.bf16.msra.mxu0 %v1968
    %1988 = vmatprep.subr.bf16.mxu0 0
    %1989 = vmatpush1.bf16.msra.mxu0 %v1967
    %1990 = vmatprep.subr.bf16.mxu0 0
    %1991 = vmatpush1.bf16.msra.mxu0 %v1966
    %1992 = vmatprep.subr.bf16.mxu0 0
    %1993 = vmatpush1.bf16.msra.mxu0 %v1965
    %1994 = vmatprep.subr.bf16.mxu0 0
    %1995 = vmatpush1.bf16.msra.mxu0 %v1964
    %1996 = vmatprep.subr.bf16.mxu0 0
    %1997 = vmatpush2.bf16.msra.mxu0 0
    %1998 = vmatprep.subr.bf16.mxu0 0
    %1999 = vmatpush2.bf16.msra.mxu0 0
    %2000 = vmatprep.subr.bf16.mxu0 0
    %2001 = vmatpush2.bf16.msra.mxu0 0
    %2002 = vmatprep.subr.bf16.mxu0 0
    %2003 = vmatpush2.bf16.msra.mxu0 0
    %2004 = vmatprep.subr.bf16.mxu0 0
    %2005 = vmatpush2.bf16.msra.mxu0 0
    %2006 = vmatprep.subr.bf16.mxu0 0
    %2007 = vmatpush2.bf16.msra.mxu0 0
    %2008 = vmatprep.subr.bf16.mxu0 0
    %2009 = vmatpush2.bf16.msra.mxu0 0
    %2010 = vmatprep.subr.bf16.mxu0 0
    %2011 = vmatpush2.bf16.msra.mxu0 0
    %2012 = vmatprep.mubr.bf16.mxu0 0
    %2013 = vmatmul.mubr.bf16.gmra.mxu0 %v1903
    %v2014 = vpop.f32.mrf.mxu0
    %v2015 = vadd.f32 %v1931, %v2014
    %v2016 = vpop.f32.mrf.mxu0
    %v2017 = vpop.f32.mrf.mxu0
    %v2018 = vadd.f32 %v1931, %v2017
    %v2019 = vpop.f32.mrf.mxu0
    %2020 = vmatprep.mubr.bf16.mxu0 0
    %2021 = vmatmul.mubr.bf16.gmra.mxu0 %v1904
    %v2022 = vpop.f32.mrf.mxu0
    %v2023 = vadd.f32 %v1931, %v2022
    %v2024 = vpop.f32.mrf.mxu0
    %v2025 = vpop.f32.mrf.mxu0
    %v2026 = vadd.f32 %v1931, %v2025
    %v2027 = vpop.f32.mrf.mxu0
    %2028 = vmatprep.mubr.bf16.mxu0 0
    %2029 = vmatmul.mubr.bf16.gmra.mxu0 %v1905
    %v2030 = vpop.f32.mrf.mxu0
    %v2031 = vadd.f32 %v1931, %v2030
    %v2032 = vpop.f32.mrf.mxu0
    %v2033 = vpop.f32.mrf.mxu0
    %v2034 = vadd.f32 %v1931, %v2033
    %v2035 = vpop.f32.mrf.mxu0
    %2036 = vmatprep.mubr.bf16.mxu0 0
    %2037 = vmatmul.mubr.bf16.gmra.mxu0 %v1906
    %v2038 = vpop.f32.mrf.mxu0
    %v2039 = vadd.f32 %v1931, %v2038
    %v2040 = vpop.f32.mrf.mxu0
    %v2041 = vpop.f32.mrf.mxu0
    %v2042 = vadd.f32 %v1931, %v2041
    %v2043 = vpop.f32.mrf.mxu0
    %2044 = vmatprep.mubr.bf16.mxu0 0
    %2045 = vmatmul.mubr.bf16.gmra.mxu0 %v1907
    %v2046 = vpop.f32.mrf.mxu0
    %v2047 = vadd.f32 %v1931, %v2046
    %v2048 = vpop.f32.mrf.mxu0
    %v2049 = vpop.f32.mrf.mxu0
    %v2050 = vadd.f32 %v1931, %v2049
    %v2051 = vpop.f32.mrf.mxu0
    %2052 = vmatprep.mubr.bf16.mxu0 0
    %2053 = vmatmul.mubr.bf16.gmra.mxu0 %v1908
    %v2054 = vpop.f32.mrf.mxu0
    %v2055 = vadd.f32 %v1931, %v2054
    %v2056 = vpop.f32.mrf.mxu0
    %v2057 = vpop.f32.mrf.mxu0
    %v2058 = vadd.f32 %v1931, %v2057
    %v2059 = vpop.f32.mrf.mxu0
    %2060 = vmatprep.mubr.bf16.mxu0 0
    %2061 = vmatmul.mubr.bf16.gmra.mxu0 %v1909
    %v2062 = vpop.f32.mrf.mxu0
    %v2063 = vadd.f32 %v1931, %v2062
    %v2064 = vpop.f32.mrf.mxu0
    %v2065 = vpop.f32.mrf.mxu0
    %v2066 = vadd.f32 %v1931, %v2065
    %v2067 = vpop.f32.mrf.mxu0
    %2068 = vmatprep.mubr.bf16.mxu0 0
    %2069 = vmatmul.mubr.bf16.gmra.mxu0 %v1910
    %v2070 = vpop.f32.mrf.mxu0
    %v2071 = vadd.f32 %v1931, %v2070
    %v2072 = vpop.f32.mrf.mxu0
    %v2073 = vpop.f32.mrf.mxu0
    %v2074 = vadd.f32 %v1931, %v2073
    %v2075 = vpop.f32.mrf.mxu0
    %2076 = vdwg.mxu0
    %v2077 = vpack.c.bf16 %v2018, %v2015
    %v2078 = vpack.c.bf16 %v2026, %v2023
    %v2079 = vpack.c.bf16 %v2034, %v2031
    %v2080 = vpack.c.bf16 %v2042, %v2039
    %v2081 = vpack.c.bf16 %v2050, %v2047
    %v2082 = vpack.c.bf16 %v2058, %v2055
    %v2083 = vpack.c.bf16 %v2066, %v2063
    %v2084 = vpack.c.bf16 %v2074, %v2071
    %2085 = vmatprep.subr.bf16.mxu0 0
    %2086 = vmatpush1.bf16.msra.mxu0 %v2084
    %2087 = vmatprep.subr.bf16.mxu0 0
    %2088 = vmatpush1.bf16.msra.mxu0 %v2083
    %2089 = vmatprep.subr.bf16.mxu0 0
    %2090 = vmatpush1.bf16.msra.mxu0 %v2082
    %2091 = vmatprep.subr.bf16.mxu0 0
    %2092 = vmatpush1.bf16.msra.mxu0 %v2081
    %2093 = vmatprep.subr.bf16.mxu0 0
    %2094 = vmatpush1.bf16.msra.mxu0 %v2080
    %2095 = vmatprep.subr.bf16.mxu0 0
    %2096 = vmatpush1.bf16.msra.mxu0 %v2079
    %2097 = vmatprep.subr.bf16.mxu0 0
    %2098 = vmatpush1.bf16.msra.mxu0 %v2078
    %2099 = vmatprep.subr.bf16.mxu0 0
    %2100 = vmatpush1.bf16.msra.mxu0 %v2077
    %2101 = vmatprep.subr.bf16.mxu0 0
    %2102 = vmatpush2.bf16.msra.mxu0 0
    %2103 = vmatprep.subr.bf16.mxu0 0
    %2104 = vmatpush2.bf16.msra.mxu0 0
    %2105 = vmatprep.subr.bf16.mxu0 0
    %2106 = vmatpush2.bf16.msra.mxu0 0
    %2107 = vmatprep.subr.bf16.mxu0 0
    %2108 = vmatpush2.bf16.msra.mxu0 0
    %2109 = vmatprep.subr.bf16.mxu0 0
    %2110 = vmatpush2.bf16.msra.mxu0 0
    %2111 = vmatprep.subr.bf16.mxu0 0
    %2112 = vmatpush2.bf16.msra.mxu0 0
    %2113 = vmatprep.subr.bf16.mxu0 0
    %2114 = vmatpush2.bf16.msra.mxu0 0
    %2115 = vmatprep.subr.bf16.mxu0 0
    %2116 = vmatpush2.bf16.msra.mxu0 0
    %2117 = vmatprep.mubr.bf16.mxu0 0
    %2118 = vmatmul.mubr.bf16.gmra.mxu0 %v320
    %v2119 = vpop.f32.mrf.mxu0
    %v2120 = vadd.f32 0.0, %v2119
    %v2121 = vpop.f32.mrf.mxu0
    %v2122 = vpop.f32.mrf.mxu0
    %v2123 = vadd.f32 0.0, %v2122
    %v2124 = vpop.f32.mrf.mxu0
    %2125 = vmatprep.mubr.bf16.mxu0 0
    %2126 = vmatmul.mubr.bf16.gmra.mxu0 %v321
    %v2127 = vpop.f32.mrf.mxu0
    %v2128 = vadd.f32 0.0, %v2127
    %v2129 = vpop.f32.mrf.mxu0
    %v2130 = vpop.f32.mrf.mxu0
    %v2131 = vadd.f32 0.0, %v2130
    %v2132 = vpop.f32.mrf.mxu0
    %2133 = vmatprep.mubr.bf16.mxu0 0
    %2134 = vmatmul.mubr.bf16.gmra.mxu0 %v322
    %v2135 = vpop.f32.mrf.mxu0
    %v2136 = vadd.f32 0.0, %v2135
    %v2137 = vpop.f32.mrf.mxu0
    %v2138 = vpop.f32.mrf.mxu0
    %v2139 = vadd.f32 0.0, %v2138
    %v2140 = vpop.f32.mrf.mxu0
    %2141 = vmatprep.mubr.bf16.mxu0 0
    %2142 = vmatmul.mubr.bf16.gmra.mxu0 %v323
    %v2143 = vpop.f32.mrf.mxu0
    %v2144 = vadd.f32 0.0, %v2143
    %v2145 = vpop.f32.mrf.mxu0
    %v2146 = vpop.f32.mrf.mxu0
    %v2147 = vadd.f32 0.0, %v2146
    %v2148 = vpop.f32.mrf.mxu0
    %2149 = vmatprep.mubr.bf16.mxu0 0
    %2150 = vmatmul.mubr.bf16.gmra.mxu0 %v324
    %v2151 = vpop.f32.mrf.mxu0
    %v2152 = vadd.f32 0.0, %v2151
    %v2153 = vpop.f32.mrf.mxu0
    %v2154 = vpop.f32.mrf.mxu0
    %v2155 = vadd.f32 0.0, %v2154
    %v2156 = vpop.f32.mrf.mxu0
    %2157 = vmatprep.mubr.bf16.mxu0 0
    %2158 = vmatmul.mubr.bf16.gmra.mxu0 %v325
    %v2159 = vpop.f32.mrf.mxu0
    %v2160 = vadd.f32 0.0, %v2159
    %v2161 = vpop.f32.mrf.mxu0
    %v2162 = vpop.f32.mrf.mxu0
    %v2163 = vadd.f32 0.0, %v2162
    %v2164 = vpop.f32.mrf.mxu0
    %2165 = vmatprep.mubr.bf16.mxu0 0
    %2166 = vmatmul.mubr.bf16.gmra.mxu0 %v326
    %v2167 = vpop.f32.mrf.mxu0
    %v2168 = vadd.f32 0.0, %v2167
    %v2169 = vpop.f32.mrf.mxu0
    %v2170 = vpop.f32.mrf.mxu0
    %v2171 = vadd.f32 0.0, %v2170
    %v2172 = vpop.f32.mrf.mxu0
    %2173 = vmatprep.mubr.bf16.mxu0 0
    %2174 = vmatmul.mubr.bf16.gmra.mxu0 %v327
    %v2175 = vpop.f32.mrf.mxu0
    %v2176 = vadd.f32 0.0, %v2175
    %v2177 = vpop.f32.mrf.mxu0
    %v2178 = vpop.f32.mrf.mxu0
    %v2179 = vadd.f32 0.0, %v2178
    %v2180 = vpop.f32.mrf.mxu0
    %2181 = vdwg.mxu0
    %v2182 = vlaneseq
    %v2183 = vshrl.u32 %v2182, 7
    %v2184 = vsub.s32 1, %v2183
    %v2185 = vrot.slane %v1902, %v2184
    %v2186 = vmul.f32 %v2120, %v2185
    %v2187 = vmul.f32 %v2123, %v2185
    %v2188 = vmul.f32 %v2128, %v2185
    %v2189 = vmul.f32 %v2131, %v2185
    %v2190 = vmul.f32 %v2136, %v2185
    %v2191 = vmul.f32 %v2139, %v2185
    %v2192 = vmul.f32 %v2144, %v2185
    %v2193 = vmul.f32 %v2147, %v2185
    %v2194 = vmul.f32 %v2152, %v2185
    %v2195 = vmul.f32 %v2155, %v2185
    %v2196 = vmul.f32 %v2160, %v2185
    %v2197 = vmul.f32 %v2163, %v2185
    %v2198 = vmul.f32 %v2168, %v2185
    %v2199 = vmul.f32 %v2171, %v2185
    %v2200 = vmul.f32 %v2176, %v2185
    %v2201 = vmul.f32 %v2179, %v2185
    %v2202 = vlaneseq
    %v2203 = vshrl.u32 %v2202, 7
    %v2204 = vsub.s32 2, %v2203
    %v2205 = vrot.slane %v1902, %v2204
    %v2206 = vadd.f32 %v2186, %v2205
    %v2207 = vadd.f32 %v2187, %v2205
    %v2208 = vadd.f32 %v2188, %v2205
    %v2209 = vadd.f32 %v2189, %v2205
    %v2210 = vadd.f32 %v2190, %v2205
    %v2211 = vadd.f32 %v2191, %v2205
    %v2212 = vadd.f32 %v2192, %v2205
    %v2213 = vadd.f32 %v2193, %v2205
    %v2214 = vadd.f32 %v2194, %v2205
    %v2215 = vadd.f32 %v2195, %v2205
    %v2216 = vadd.f32 %v2196, %v2205
    %v2217 = vadd.f32 %v2197, %v2205
    %v2218 = vadd.f32 %v2198, %v2205
    %v2219 = vadd.f32 %v2199, %v2205
    %v2220 = vadd.f32 %v2200, %v2205
    %v2221 = vadd.f32 %v2201, %v2205
    %v2222 = vmax.f32 %v2206, 0.0
    %v2223 = vmax.f32 %v2207, 0.0
    %v2224 = vmax.f32 %v2208, 0.0
    %v2225 = vmax.f32 %v2209, 0.0
    %v2226 = vmax.f32 %v2210, 0.0
    %v2227 = vmax.f32 %v2211, 0.0
    %v2228 = vmax.f32 %v2212, 0.0
    %v2229 = vmax.f32 %v2213, 0.0
    %v2230 = vmax.f32 %v2214, 0.0
    %v2231 = vmax.f32 %v2215, 0.0
    %v2232 = vmax.f32 %v2216, 0.0
    %v2233 = vmax.f32 %v2217, 0.0
    %v2234 = vmax.f32 %v2218, 0.0
    %v2235 = vmax.f32 %v2219, 0.0
    %v2236 = vmax.f32 %v2220, 0.0
    %v2237 = vmax.f32 %v2221, 0.0
    %v2238 = vadd.f32 %v2222, %v1885
    %v2239 = vadd.f32 %v2223, %v1886
    %v2240 = vadd.f32 %v2224, %v1887
    %v2241 = vadd.f32 %v2225, %v1888
    %v2242 = vadd.f32 %v2226, %v1889
    %v2243 = vadd.f32 %v2227, %v1890
    %v2244 = vadd.f32 %v2228, %v1891
    %v2245 = vadd.f32 %v2229, %v1892
    %v2246 = vadd.f32 %v2230, %v1893
    %v2247 = vadd.f32 %v2231, %v1894
    %v2248 = vadd.f32 %v2232, %v1895
    %v2249 = vadd.f32 %v2233, %v1896
    %v2250 = vadd.f32 %v2234, %v1897
    %v2251 = vadd.f32 %v2235, %v1898
    %v2252 = vadd.f32 %v2236, %v1899
    %v2253 = vadd.f32 %v2237, %v1900
    %2254 = vst [vmem:[#allocation10] sm:$0xff] %v2238
    %2255 = vst [vmem:[#allocation10 + $0x8] sm:$0xff] %v2239
    %2256 = vst [vmem:[#allocation10 + $0x10] sm:$0xff] %v2240
    %2257 = vst [vmem:[#allocation10 + $0x18] sm:$0xff] %v2241
    %2258 = vst [vmem:[#allocation10 + $0x20] sm:$0xff] %v2242
    %2259 = vst [vmem:[#allocation10 + $0x28] sm:$0xff] %v2243
    %2260 = vst [vmem:[#allocation10 + $0x30] sm:$0xff] %v2244
    %2261 = vst [vmem:[#allocation10 + $0x38] sm:$0xff] %v2245
    %2262 = vst [vmem:[#allocation10 + $0x40] sm:$0xff] %v2246
    %2263 = vst [vmem:[#allocation10 + $0x48] sm:$0xff] %v2247
    %2264 = vst [vmem:[#allocation10 + $0x50] sm:$0xff] %v2248
    %2265 = vst [vmem:[#allocation10 + $0x58] sm:$0xff] %v2249
    %2266 = vst [vmem:[#allocation10 + $0x60] sm:$0xff] %v2250
    %2267 = vst [vmem:[#allocation10 + $0x68] sm:$0xff] %v2251
    %2268 = vst [vmem:[#allocation10 + $0x70] sm:$0xff] %v2252
    %2269 = vst [vmem:[#allocation10 + $0x78] sm:$0xff] %v2253
    // Predicated region
    $region34: #{gnn_encoder_forward.1} parent=1 // pred_check
      _
    $region35: #{gnn_encoder_forward.1} parent=1 // pred_check_branch
      %2271 = sbr.rel (0) target = $region37
    $region36: #{gnn_encoder_forward.1} parent=1 // pred_region
      %s2273 = ssub.s32 2048, 2048
      %2274 = vsyncadd [#allocation4], %s2273
      %s2275 = sshll.u32 [#allocation10], 4
      %s2276 = int_to_ptr.vmem [resolvable:$true] %s2275
      %2281 = dma.vmem_to_hbm [thread:$0]  %s2276, 2048, %s4, [#allocation4], 128, 128, 8
    $region37: #{gnn_encoder_forward.1} parent=1 // pred_fallthru
      _
    // Predicated region
    $region38: #{gnn_encoder_forward.1} parent=1 // pred_check
      _
    $region39: #{gnn_encoder_forward.1} parent=1 // pred_check_branch
      %2283 = sbr.rel (0) target = $region41
    $region40: #{gnn_encoder_forward.1} parent=1 // pred_region
      %2284 = dma.done [#allocation4], 2048
    $region41: #{gnn_encoder_forward.1} parent=1 // pred_fallthru
      _
    %2285 = vsyncpa [#allocation3], 1
    %2286 = vsyncpa [#allocation6], 1
    %2287 = vsyncpa [#allocation9], 1
    %2288 = vsyncpa [#allocation4], 1

</llo_original>
